<compile_context>
chip_gen: v7x
topology: tpu7x:2x2x1
jax: 0.10.0
libtpu: 0.0.40
codegen_flags: <defaults>
</compile_context>

<pallas_src>
import jax
import jax.numpy as jnp
from jax.experimental import pallas as pl
from jax.experimental.pallas import tpu as pltpu

# ----------------------------- configuration --------------------------------
N_ATOM_TYPES = 5
N_CHARGES = 6
N_BOND_TYPES = 5
N_HIDDEN_SCALARS = 32
N_HIDDEN_EDGE = 32
N_VEC_CHANNELS = 4          # >= 3 (unused: convs are TODO)
RBF_DMAX = 20.0
RBF_DIM = 16
N_RECYCLES = 1
CONVS_PER_UPDATE = 2
N_MOLECULE_UPDATES = 2
SEPARATE_MOL_UPDATERS = False

N_NODE_IN = N_ATOM_TYPES + N_CHARGES + 1      # 12
N_NODE_OUT = N_ATOM_TYPES + N_CHARGES         # 11
N_NODE_PACK_OUT = N_HIDDEN_SCALARS + N_NODE_OUT  # 43 (scalars || head logits)

# Row-tile caps. Lane padding to 128 means a (tm, F<=128) f32 block costs
# tm*128*4 B in VMEM; with the reduced stream counts these caps keep the
# double-buffered working set well under v5e's 16 MiB default scoped VMEM and
# v7x's 32 MiB (64 MiB physical per TC), while amortizing the ~0.35 us/step
# overhead (measured roofline: 512-row tiles ~85%, 1024 ~86%).
NODE_ROW_TILE_CAP = 1024
EDGE_ROW_TILE_CAP = 512     # edge kernel stacks upper+lower -> 2*tm rows/step

# packed-weight row offsets (node kernel, 32-lane pack)
_N_EW1, _N_EW2, _N_HW1, _N_HW2, _N_VEC = 0, 16, 48, 80, 112
_N_PACK_ROWS = 120
# packed-weight row offsets (edge kernel, 32-lane pack)
_E_EW1, _E_EW2, _E_UEW1, _E_UW2, _E_HW1, _E_HW2, _E_VEC = 0, 8, 40, 72, 104, 136, 168
_E_PACK_ROWS = 184


def _row_tile(n, cap=NODE_ROW_TILE_CAP):
    """Row tile: >=2 grid steps whenever possible (v7x megacore), sublane (8)
    aligned, capped for VMEM.  Last tile may be partial (rows are independent;
    OOB output rows are masked by Pallas)."""
    if n <= 8:
        return n                           # single sublane group; can't split
    half = -(-n // 2)                      # cdiv(n, 2)
    return min(cap, -(-half // 8) * 8)     # round up to sublane multiple


def _silu(x):
    return x * jax.nn.sigmoid(x)


def _layernorm(x, gamma, beta, eps=1e-5):
    mu = jnp.mean(x, axis=-1, keepdims=True)
    var = jnp.mean((x - mu) ** 2, axis=-1, keepdims=True)
    return (x - mu) * jax.lax.rsqrt(var + eps) * gamma + beta


def _full_spec(shape):
    return pl.BlockSpec(shape, lambda i: (0, 0))


# --------------------------- parameter packing -------------------------------
def _pack_node_params(emb_params, head_params):
    """Pack scalar_embedding + node_output_head params into one (120,32) array."""
    ew1, eb1, ew2, eb2, eg, ebe = emb_params
    hw1, hb1, hw2, hb2 = head_params
    H = N_HIDDEN_SCALARS
    z = lambda r: jnp.zeros((r, H), jnp.float32)
    ew1_p = jnp.concatenate([ew1, z(16 - N_NODE_IN)], axis=0)          # rows 0:16
    hw2_p = jnp.pad(hw2, ((0, 0), (0, H - N_NODE_OUT)))                # (32, 32)
    vecs = jnp.stack([eb1, eb2, eg, ebe, hb1,
                      jnp.pad(hb2, (0, H - N_NODE_OUT))], axis=0)      # (6, 32)
    vecs = jnp.concatenate([vecs, z(2)], axis=0)                       # (8, 32)
    return jnp.concatenate([ew1_p, ew2, hw1, hw2_p, vecs], axis=0)     # (120, 32)


def _pack_edge_params(emb_params, upd_params, head_params):
    """Pack edge_embedding + EdgeUpdate + to_edge_logits params.

    Returns (pack32: (184,32), wh: (64,64)).  wh columns 0:32 apply the
    [h_src || h_dst] (upper) ordering, columns 32:64 the swapped (lower)
    ordering, so a single matmul yields both halves' node contributions.
    """
    ew1, eb1, ew2, eb2, eg, ebe = emb_params
    uw1, ub1, uw2, ub2, ug, ube = upd_params
    hw1, hb1, hw2, hb2 = head_params
    H, S, B = N_HIDDEN_EDGE, N_HIDDEN_SCALARS, N_BOND_TYPES
    z = lambda r: jnp.zeros((r, H), jnp.float32)
    ew1_p = jnp.concatenate([ew1, z(8 - B)], axis=0)                   # rows 0:8
    hw2_p = jnp.pad(hw2, ((0, 0), (0, H - B)))                         # (32, 32)
    ue_w1 = uw1[2 * S:]                                                # (32, 32)
    vecs = jnp.stack([eb1, eb2, eg, ebe, ub1, ub2, ug, ube, hb1,
                      jnp.pad(hb2, (0, H - B))], axis=0)               # (10, 32)
    vecs = jnp.concatenate([vecs, z(6)], axis=0)                       # (16, 32)
    pack32 = jnp.concatenate([ew1_p, ew2, ue_w1, uw2, hw1, hw2_p, vecs], axis=0)

    us_w1, ud_w1 = uw1[:S], uw1[S:2 * S]
    w_up = jnp.concatenate([us_w1, ud_w1], axis=0)                     # (64, 32)
    w_low = jnp.concatenate([ud_w1, us_w1], axis=0)                    # (64, 32)
    wh = jnp.concatenate([w_up, w_low], axis=1)                        # (64, 64)
    return pack32, wh


# ------------------------------- kernels -------------------------------------
def fused_node_kernel(x_ref, w_ref, o_ref):
    """scalar_embedding (Lin->SiLU->Lin->SiLU->LN) fused with node_output_head.

    One packed weight input, one packed output ([:, :32] = node scalars,
    [:, 32:43] = head logits)."""
    H = N_HIDDEN_SCALARS
    # hoisted parameter loads (once per grid step)
    ew1 = w_ref[_N_EW1:_N_EW1 + N_NODE_IN, :]
    ew2 = w_ref[_N_EW2:_N_EW2 + H, :]
    hw1 = w_ref[_N_HW1:_N_HW1 + H, :]
    hw2 = w_ref[_N_HW2:_N_HW2 + H, :]
    eb1 = w_ref[_N_VEC + 0:_N_VEC + 1, :]
    eb2 = w_ref[_N_VEC + 1:_N_VEC + 2, :]
    eg = w_ref[_N_VEC + 2:_N_VEC + 3, :]
    ebe = w_ref[_N_VEC + 3:_N_VEC + 4, :]
    hb1 = w_ref[_N_VEC + 4:_N_VEC + 5, :]
    hb2 = w_ref[_N_VEC + 5:_N_VEC + 6, :]

    x = x_ref[...]
    h = _silu(jnp.dot(x, ew1, preferred_element_type=jnp.float32) + eb1)
    h = _silu(jnp.dot(h, ew2, preferred_element_type=jnp.float32) + eb2)
    hn = _layernorm(h, eg, ebe)
    # TODO(synk): GVPConv layers undefined -> identity on scalar features, so
    # the output head consumes the embedded scalars directly.
    y = _silu(jnp.dot(hn, hw1, preferred_element_type=jnp.float32) + hb1)
    head = jnp.dot(y, hw2, preferred_element_type=jnp.float32) + hb2
    o_ref[:, :H] = hn
    o_ref[:, H:] = head[:, :N_NODE_OUT]


def make_fused_edge_kernel(n_updates):
    """edge_embedding -> (EdgeUpdate x n_updates) -> (upper+lower) -> to_edge_logits.

    Upper and lower edge halves are stacked along rows so every op runs once
    per grid step on a (2*tm, 32) tile."""

    def kernel(e_ref, h_ref, w_ref, wh_ref, o_ref):
        H = N_HIDDEN_EDGE
        # --- hoisted parameter loads (once per grid step) ---
        ew1 = w_ref[_E_EW1:_E_EW1 + N_BOND_TYPES, :]
        ew2 = w_ref[_E_EW2:_E_EW2 + H, :]
        ue_w1 = w_ref[_E_UEW1:_E_UEW1 + H, :]
        uw2 = w_ref[_E_UW2:_E_UW2 + H, :]
        hw1 = w_ref[_E_HW1:_E_HW1 + H, :]
        hw2 = w_ref[_E_HW2:_E_HW2 + H, :]
        eb1 = w_ref[_E_VEC + 0:_E_VEC + 1, :]
        eb2 = w_ref[_E_VEC + 1:_E_VEC + 2, :]
        eg = w_ref[_E_VEC + 2:_E_VEC + 3, :]
        ebe = w_ref[_E_VEC + 3:_E_VEC + 4, :]
        ub1 = w_ref[_E_VEC + 4:_E_VEC + 5, :]
        ub2 = w_ref[_E_VEC + 5:_E_VEC + 6, :]
        ug = w_ref[_E_VEC + 6:_E_VEC + 7, :]
        ube = w_ref[_E_VEC + 7:_E_VEC + 8, :]
        hb1 = w_ref[_E_VEC + 8:_E_VEC + 9, :]
        hb2 = w_ref[_E_VEC + 9:_E_VEC + 10, :]
        wh = wh_ref[...]                                   # (64, 64)

        # --- stack upper & lower halves along rows: (2*tm, B) ---
        e_in = jnp.concatenate([e_ref[0], e_ref[1]], axis=0)

        # edge_embedding, once on the stacked tile
        h = _silu(jnp.dot(e_in, ew1, preferred_element_type=jnp.float32) + eb1)
        h = _silu(jnp.dot(h, ew2, preferred_element_type=jnp.float32) + eb2)
        ef = _layernorm(h, eg, ebe)

        # Node-scalar contribution to the EdgeUpdate pre-activation.  Node
        # scalars are constant across updates (GVPConv TODO-identity) so this
        # is computed ONCE: a single K=64 matmul yields the upper ordering in
        # lanes [:32] and the lower ([h_dst || h_src]) ordering in [32:].
        hz_both = jnp.dot(h_ref[...], wh, preferred_element_type=jnp.float32)  # (tm, 64)
        hz = jnp.concatenate([hz_both[:, :H], hz_both[:, H:]], axis=0) + ub1   # (2tm, 32)

        for _ in range(n_updates):                         # static unroll
            # split-weight form of  cat([h_src, h_dst, edge_feats]) @ W1
            z = hz + jnp.dot(ef, ue_w1, preferred_element_type=jnp.float32)
            u = _silu(z)
            u = _silu(jnp.dot(u, uw2, preferred_element_type=jnp.float32) + ub2)
            ef = _layernorm(ef + u, ug, ube)

        half = ef.shape[0] // 2
        s = ef[:half] + ef[half:]                          # ue_feats + le_feats
        y = _silu(jnp.dot(s, hw1, preferred_element_type=jnp.float32) + hb1)
        logits = jnp.dot(y, hw2, preferred_element_type=jnp.float32) + hb2
        o_ref[...] = logits[:, :N_BOND_TYPES]

    return kernel


def dist_rbf_kernel(xdiff_ref, xn_ref, d_ref):
    """precompute_distances: unit x_diff and RBF(dij).

    TODO(synk): currently unused -- its outputs feed only the undefined
    GVPConv layers, so the forward pass does not call it (dead work removed).
    """
    xd = xdiff_ref[...]
    sq = jnp.sum(xd * xd, axis=-1, keepdims=True)
    dij = jnp.sqrt(jnp.maximum(sq, 1e-8)) + 1e-8          # _norm_no_nan + 1e-8
    xn_ref[...] = xd / dij
    mu = jax.lax.broadcasted_iota(jnp.float32, (1, RBF_DIM), 1) * (RBF_DMAX / (RBF_DIM - 1))
    sigma = RBF_DMAX / RBF_DIM
    d_ref[...] = jnp.exp(-(((dij - mu) / sigma) ** 2))


# ------------------------------ pallas wrappers ------------------------------
def fused_node_forward(nsf, emb_params, head_params):
    n, fin = nsf.shape
    wpack = _pack_node_params(emb_params, head_params)
    tm = _row_tile(n, NODE_ROW_TILE_CAP)
    row = lambda f: pl.BlockSpec((tm, f), lambda i: (i, 0))

    out = pl.pallas_call(
        fused_node_kernel,
        out_shape=jax.ShapeDtypeStruct((n, N_NODE_PACK_OUT), jnp.float32),
        grid=(pl.cdiv(n, tm),),
        in_specs=[row(fin), _full_spec(wpack.shape)],
        out_specs=row(N_NODE_PACK_OUT),
        compiler_params=pltpu.CompilerParams(dimension_semantics=("parallel",)),
    )(nsf, wpack)
    return out[:, :N_HIDDEN_SCALARS], out[:, N_HIDDEN_SCALARS:]


def fused_edge_forward(e_t, h_cat, emb_params, upd_params, head_params, n_updates):
    E, B = e_t.shape
    Eh = E // 2
    # [0] = upper edges, [1] = lower (reversed) edges -- a free reshape.
    e3 = e_t.reshape(2, Eh, B)
    wpack, wh = _pack_edge_params(emb_params, upd_params, head_params)

    tm = _row_tile(Eh, EDGE_ROW_TILE_CAP)
    return pl.pallas_call(
        make_fused_edge_kernel(n_updates),
        out_shape=jax.ShapeDtypeStruct((Eh, B), jnp.float32),
        grid=(pl.cdiv(Eh, tm),),
        in_specs=[pl.BlockSpec((2, tm, B), lambda i: (0, i, 0)),
                  pl.BlockSpec((tm, 2 * N_HIDDEN_SCALARS), lambda i: (i, 0)),
                  _full_spec(wpack.shape),
                  _full_spec(wh.shape)],
        out_specs=pl.BlockSpec((tm, B), lambda i: (i, 0)),
        compiler_params=pltpu.CompilerParams(dimension_semantics=("parallel",)),
    )(e3, h_cat, wpack, wh)


def dist_rbf(xdiff_raw):
    """Unused by forward() until GVPConv exists; kept for completeness."""
    e = xdiff_raw.shape[0]
    tm = _row_tile(e)
    return pl.pallas_call(
        dist_rbf_kernel,
        out_shape=(jax.ShapeDtypeStruct((e, 3), jnp.float32),
                   jax.ShapeDtypeStruct((e, RBF_DIM), jnp.float32)),
        grid=(pl.cdiv(e, tm),),
        in_specs=[pl.BlockSpec((tm, 3), lambda i: (i, 0))],
        out_specs=(pl.BlockSpec((tm, 3), lambda i: (i, 0)),
                   pl.BlockSpec((tm, RBF_DIM), lambda i: (i, 0))),
        compiler_params=pltpu.CompilerParams(dimension_semantics=("parallel",)),
    )(xdiff_raw)


# ------------------------------ parameters -----------------------------------
def _linear_params(key, fin, fout):
    k1, k2 = jax.random.split(key)
    w = jax.random.normal(k1, (fin, fout), jnp.float32) * (1.0 / jnp.sqrt(fin))
    b = jax.random.normal(k2, (fout,), jnp.float32) * 0.01
    return w, b


def init_params(key):
    keys = jax.random.split(key, 16)
    p = {}
    # scalar_embedding: Linear(A+C+1, H) SiLU Linear(H, H) SiLU LN(H)
    w1, b1 = _linear_params(keys[0], N_NODE_IN, N_HIDDEN_SCALARS)
    w2, b2 = _linear_params(keys[1], N_HIDDEN_SCALARS, N_HIDDEN_SCALARS)
    p["scalar_embedding"] = (w1, b1, w2, b2,
                             jnp.ones((N_HIDDEN_SCALARS,)), jnp.zeros((N_HIDDEN_SCALARS,)))
    # edge_embedding: Linear(B, He) SiLU Linear(He, He) SiLU LN(He)
    w1, b1 = _linear_params(keys[2], N_BOND_TYPES, N_HIDDEN_EDGE)
    w2, b2 = _linear_params(keys[3], N_HIDDEN_EDGE, N_HIDDEN_EDGE)
    p["edge_embedding"] = (w1, b1, w2, b2,
                           jnp.ones((N_HIDDEN_EDGE,)), jnp.zeros((N_HIDDEN_EDGE,)))
    # edge_updaters (separate_mol_updaters=False -> single updater)
    cat_dim = 2 * N_HIDDEN_SCALARS + N_HIDDEN_EDGE   # update_edge_w_distance=False
    w1, b1 = _linear_params(keys[4], cat_dim, N_HIDDEN_EDGE)
    w2, b2 = _linear_params(keys[5], N_HIDDEN_EDGE, N_HIDDEN_EDGE)
    p["edge_updaters"] = [(w1, b1, w2, b2,
                           jnp.ones((N_HIDDEN_EDGE,)), jnp.zeros((N_HIDDEN_EDGE,)))]
    # node_output_head: Linear(H, H) SiLU Linear(H, A+C)
    w1, b1 = _linear_params(keys[6], N_HIDDEN_SCALARS, N_HIDDEN_SCALARS)
    w2, b2 = _linear_params(keys[7], N_HIDDEN_SCALARS, N_NODE_OUT)
    p["node_output_head"] = (w1, b1, w2, b2)
    # to_edge_logits: Linear(He, He) SiLU Linear(He, B)
    w1, b1 = _linear_params(keys[8], N_HIDDEN_EDGE, N_HIDDEN_EDGE)
    w2, b2 = _linear_params(keys[9], N_HIDDEN_EDGE, N_BOND_TYPES)
    p["to_edge_logits"] = (w1, b1, w2, b2)
    return p


# ------------------------------- forward --------------------------------------
@jax.jit
def endpoint_vector_field_forward(params, a_t, c_t, x_t, e_t, t,
                                  node_batch_idx, src_idxs, dst_idxs):
    # node scalar features = cat([a_t, t[node_batch_idx], c_t], dim=-1)   (tiny glue)
    nsf = jnp.concatenate([a_t, t[node_batch_idx][:, None], c_t], axis=-1)

    # fused scalar_embedding + node_output_head (single pallas_call, 1 packed output)
    node_scalars, node_out = fused_node_forward(
        nsf, params["scalar_embedding"], params["node_output_head"])
    atom_type_logits = node_out[:, :N_ATOM_TYPES]
    atom_charge_logits = node_out[:, N_ATOM_TYPES:]

    # Edge path.  Convention: first E/2 edges are the "upper" edges, the
    # second E/2 their exact reversals, so node_scalars[src] of a lower edge
    # equals node_scalars[dst] of its upper partner.  Gather ONCE for the
    # upper edges only; the lower ([h_dst || h_src]) ordering is derived
    # in-kernel via the swapped column block of the fused h-weight.
    # node_scalars are constant across the conv/update schedule (GVPConv is
    # TODO-identity), so these are the only gathers.
    Eh = e_t.shape[0] // 2
    h_cat = jnp.concatenate([node_scalars[src_idxs[:Eh]],
                             node_scalars[dst_idxs[:Eh]]], axis=-1)       # (Eh, 64)

    # number of EdgeUpdate applications implied by the reference conv schedule
    n_convs = CONVS_PER_UPDATE * N_MOLECULE_UPDATES
    n_edge_updates = N_RECYCLES * sum(
        1 for ci in range(n_convs)
        if ci != 0 and (ci + 1) % CONVS_PER_UPDATE == 0)

    # fused edge_embedding -> EdgeUpdate^n -> (ue+le) -> to_edge_logits
    # (SEPARATE_MOL_UPDATERS=False -> a single updater's weights reused)
    edge_logits = fused_edge_forward(
        e_t, h_cat,
        params["edge_embedding"], params["edge_updaters"][0],
        params["to_edge_logits"], n_edge_updates)

    # TODO(synk): NodePositionUpdate wraps undefined GVP -> positions unchanged.
    # TODO(synk): precompute_distances (x_diff, RBF) feeds only the undefined
    #             GVPConv layers, so it is not computed here (dead work removed);
    #             dist_rbf() above implements it for when GVPConv lands.
    # apply_softmax=False, remove_com=False (defaults); NSimplex().send_to not reproducible.
    return {"x": x_t, "a": atom_type_logits,
            "c": atom_charge_logits, "e": edge_logits}


# --------------------------------- main ---------------------------------------
if __name__ == "__main__":
    key = jax.random.PRNGKey(0)
    k_param, k_a, k_c, k_x, k_e, k_t = jax.random.split(key, 6)

    params = init_params(k_param)

    num_nodes = 16            # 2 molecules x 8 atoms
    num_edges = 32            # 16 upper + 16 lower (reversed) edges
    batch_size = 2

    a_t = jax.random.normal(k_a, (num_nodes, N_ATOM_TYPES), jnp.float32)
    c_t = jax.random.normal(k_c, (num_nodes, N_CHARGES), jnp.float32)
    x_t = jax.random.normal(k_x, (num_nodes, 3), jnp.float32)
    e_t = jax.random.normal(k_e, (num_edges, N_BOND_TYPES), jnp.float32)
    t = jax.random.uniform(k_t, (batch_size,), jnp.float32)

    node_batch_idx = jnp.concatenate(
        [jnp.zeros((8,), jnp.int32), jnp.ones((8,), jnp.int32)])

    # ring edges inside each molecule; upper edges first, then reversed (lower)
    upper_src = jnp.concatenate([jnp.arange(8, dtype=jnp.int32),
                                 8 + jnp.arange(8, dtype=jnp.int32)])
    upper_dst = jnp.concatenate([(jnp.arange(8, dtype=jnp.int32) + 1) % 8,
                                 8 + (jnp.arange(8, dtype=jnp.int32) + 1) % 8])
    src_idxs = jnp.concatenate([upper_src, upper_dst])
    dst_idxs = jnp.concatenate([upper_dst, upper_src])

    out = endpoint_vector_field_forward(params, a_t, c_t, x_t, e_t, t,
                                        node_batch_idx, src_idxs, dst_idxs)
    out = jax.tree_util.tree_map(jax.block_until_ready, out)

    assert out["x"].shape == (num_nodes, 3)
    assert out["a"].shape == (num_nodes, N_ATOM_TYPES)
    assert out["c"].shape == (num_nodes, N_CHARGES)
    assert out["e"].shape == (num_edges // 2, N_BOND_TYPES)
    assert all(bool(jnp.all(jnp.isfinite(v))) for v in out.values())
    print("KERNEL_OK")
</pallas_src>

<mosaic_0001>
module attributes {stable_mosaic.version = 11 : i64} {
  func.func @fused_node_kernel(%arg0: i32, %arg1: memref<8x12xf32, #tpu.memory_space<vmem>>, %arg2: memref<120x32xf32, #tpu.memory_space<vmem>>, %arg3: memref<8x43xf32, #tpu.memory_space<vmem>>) attributes {dimension_semantics = [#tpu.dimension_semantics<parallel>], iteration_bounds = array<i64: 2>, scalar_prefetch = 0 : i64, scratch_operands = 0 : i64, tpu.core_type = #tpu.core_type<tc>, window_params = [{transform_indices = @transform_0, window_bounds = array<i64: 8, 12>}, {pipeline_mode = #tpu.pipeline_mode<synchronous>, transform_indices = @transform_1, window_bounds = array<i64: 120, 32>}, {transform_indices = @transform_2, window_bounds = array<i64: 8, 43>}]} {
    %c0 = arith.constant 0 : index
    %c0_0 = arith.constant 0 : index
    %0 = vector.load %arg2[%c0, %c0_0] : memref<120x32xf32, #tpu.memory_space<vmem>>, vector<12x32xf32>
    %c16 = arith.constant 16 : index
    %c0_1 = arith.constant 0 : index
    %1 = vector.load %arg2[%c16, %c0_1] : memref<120x32xf32, #tpu.memory_space<vmem>>, vector<32x32xf32>
    %c48 = arith.constant 48 : index
    %c0_2 = arith.constant 0 : index
    %2 = vector.load %arg2[%c48, %c0_2] : memref<120x32xf32, #tpu.memory_space<vmem>>, vector<32x32xf32>
    %c80 = arith.constant 80 : index
    %c0_3 = arith.constant 0 : index
    %3 = vector.load %arg2[%c80, %c0_3] : memref<120x32xf32, #tpu.memory_space<vmem>>, vector<32x32xf32>
    %c112 = arith.constant 112 : index
    %c0_4 = arith.constant 0 : index
    %4 = vector.load %arg2[%c112, %c0_4] : memref<120x32xf32, #tpu.memory_space<vmem>>, vector<1x32xf32>
    %c113 = arith.constant 113 : index
    %c0_5 = arith.constant 0 : index
    %5 = vector.load %arg2[%c113, %c0_5] : memref<120x32xf32, #tpu.memory_space<vmem>>, vector<1x32xf32>
    %c114 = arith.constant 114 : index
    %c0_6 = arith.constant 0 : index
    %6 = vector.load %arg2[%c114, %c0_6] : memref<120x32xf32, #tpu.memory_space<vmem>>, vector<1x32xf32>
    %c115 = arith.constant 115 : index
    %c0_7 = arith.constant 0 : index
    %7 = vector.load %arg2[%c115, %c0_7] : memref<120x32xf32, #tpu.memory_space<vmem>>, vector<1x32xf32>
    %c116 = arith.constant 116 : index
    %c0_8 = arith.constant 0 : index
    %8 = vector.load %arg2[%c116, %c0_8] : memref<120x32xf32, #tpu.memory_space<vmem>>, vector<1x32xf32>
    %c117 = arith.constant 117 : index
    %c0_9 = arith.constant 0 : index
    %9 = vector.load %arg2[%c117, %c0_9] : memref<120x32xf32, #tpu.memory_space<vmem>>, vector<1x32xf32>
    %c0_10 = arith.constant 0 : index
    %c0_11 = arith.constant 0 : index
    %10 = vector.load %arg1[%c0_10, %c0_11] : memref<8x12xf32, #tpu.memory_space<vmem>>, vector<8x12xf32>
    %cst = arith.constant dense<0.000000e+00> : vector<8x32xf32>
    %11 = tpu.matmul %10, %0, %cst {dimension_numbers = #tpu.dot_dimension_numbers<[1], [0], [0], [1], [0, 0, 1, 1], [], []>} : vector<8x12xf32>, vector<12x32xf32>, vector<8x32xf32> -> vector<8x32xf32>
    %12 = vector.broadcast %4 : vector<1x32xf32> to vector<8x32xf32>
    %13 = arith.addf %11, %12 : vector<8x32xf32>
    %14 = arith.negf %13 : vector<8x32xf32>
    %15 = math.exp %14 : vector<8x32xf32>
    %cst_12 = arith.constant 1.000000e+00 : f32
    %16 = vector.broadcast %cst_12 : f32 to vector<8x32xf32>
    %17 = arith.addf %16, %15 : vector<8x32xf32>
    %18 = arith.divf %16, %17 : vector<8x32xf32>
    %19 = arith.mulf %13, %18 : vector<8x32xf32>
    %cst_13 = arith.constant dense<0.000000e+00> : vector<8x32xf32>
    %20 = tpu.matmul %19, %1, %cst_13 {dimension_numbers = #tpu.dot_dimension_numbers<[1], [0], [0], [1], [0, 0, 1, 1], [], []>} : vector<8x32xf32>, vector<32x32xf32>, vector<8x32xf32> -> vector<8x32xf32>
    %21 = vector.broadcast %5 : vector<1x32xf32> to vector<8x32xf32>
    %22 = arith.addf %20, %21 : vector<8x32xf32>
    %23 = arith.negf %22 : vector<8x32xf32>
    %24 = math.exp %23 : vector<8x32xf32>
    %cst_14 = arith.constant 1.000000e+00 : f32
    %25 = vector.broadcast %cst_14 : f32 to vector<8x32xf32>
    %26 = arith.addf %25, %24 : vector<8x32xf32>
    %27 = arith.divf %25, %26 : vector<8x32xf32>
    %28 = arith.mulf %22, %27 : vector<8x32xf32>
    %cst_15 = arith.constant dense<0.000000e+00> : vector<8xf32>
    %29 = vector.multi_reduction <add>, %28, %cst_15 [1] : vector<8x32xf32> to vector<8xf32>
    %30 = vector.shape_cast %29 : vector<8xf32> to vector<8x1xf32>
    %cst_16 = arith.constant 3.200000e+01 : f32
    %31 = vector.broadcast %cst_16 : f32 to vector<8x1xf32>
    %32 = arith.divf %30, %31 : vector<8x1xf32>
    %33 = vector.broadcast %32 : vector<8x1xf32> to vector<8x32xf32>
    %34 = arith.subf %28, %33 : vector<8x32xf32>
    %35 = arith.mulf %34, %34 : vector<8x32xf32>
    %cst_17 = arith.constant dense<0.000000e+00> : vector<8xf32>
    %36 = vector.multi_reduction <add>, %35, %cst_17 [1] : vector<8x32xf32> to vector<8xf32>
    %37 = vector.shape_cast %36 : vector<8xf32> to vector<8x1xf32>
    %cst_18 = arith.constant 3.200000e+01 : f32
    %38 = vector.broadcast %cst_18 : f32 to vector<8x1xf32>
    %39 = arith.divf %37, %38 : vector<8x1xf32>
    %40 = vector.broadcast %32 : vector<8x1xf32> to vector<8x32xf32>
    %41 = arith.subf %28, %40 : vector<8x32xf32>
    %cst_19 = arith.constant 9.99999974E-6 : f32
    %42 = vector.broadcast %cst_19 : f32 to vector<8x1xf32>
    %43 = arith.addf %39, %42 : vector<8x1xf32>
    %44 = math.rsqrt %43 : vector<8x1xf32>
    %45 = vector.broadcast %44 : vector<8x1xf32> to vector<8x32xf32>
    %46 = arith.mulf %41, %45 : vector<8x32xf32>
    %47 = vector.broadcast %6 : vector<1x32xf32> to vector<8x32xf32>
    %48 = arith.mulf %46, %47 : vector<8x32xf32>
    %49 = vector.broadcast %7 : vector<1x32xf32> to vector<8x32xf32>
    %50 = arith.addf %48, %49 : vector<8x32xf32>
    %cst_20 = arith.constant dense<0.000000e+00> : vector<8x32xf32>
    %51 = tpu.matmul %50, %2, %cst_20 {dimension_numbers = #tpu.dot_dimension_numbers<[1], [0], [0], [1], [0, 0, 1, 1], [], []>} : vector<8x32xf32>, vector<32x32xf32>, vector<8x32xf32> -> vector<8x32xf32>
    %52 = vector.broadcast %8 : vector<1x32xf32> to vector<8x32xf32>
    %53 = arith.addf %51, %52 : vector<8x32xf32>
    %54 = arith.negf %53 : vector<8x32xf32>
    %55 = math.exp %54 : vector<8x32xf32>
    %cst_21 = arith.constant 1.000000e+00 : f32
    %56 = vector.broadcast %cst_21 : f32 to vector<8x32xf32>
    %57 = arith.addf %56, %55 : vector<8x32xf32>
    %58 = arith.divf %56, %57 : vector<8x32xf32>
    %59 = arith.mulf %53, %58 : vector<8x32xf32>
    %cst_22 = arith.constant dense<0.000000e+00> : vector<8x32xf32>
    %60 = tpu.matmul %59, %3, %cst_22 {dimension_numbers = #tpu.dot_dimension_numbers<[1], [0], [0], [1], [0, 0, 1, 1], [], []>} : vector<8x32xf32>, vector<32x32xf32>, vector<8x32xf32> -> vector<8x32xf32>
    %61 = vector.broadcast %9 : vector<1x32xf32> to vector<8x32xf32>
    %62 = arith.addf %60, %61 : vector<8x32xf32>
    %c0_23 = arith.constant 0 : index
    %c0_24 = arith.constant 0 : index
    %63 = vector.load %arg3[%c0_23, %c0_24] : memref<8x43xf32, #tpu.memory_space<vmem>>, vector<8x32xf32>
    tpu.vector_store %arg3[%c0_23, %c0_24], %50 {strides = array<i32>} : memref<8x43xf32, #tpu.memory_space<vmem>>, vector<8x32xf32>,
    %64 = vector.extract_strided_slice %62 {offsets = [0, 0], sizes = [8, 11], strides = [1, 1]} : vector<8x32xf32> to vector<8x11xf32>
    %c0_25 = arith.constant 0 : index
    %c32 = arith.constant 32 : index
    %65 = vector.load %arg3[%c0_25, %c32] : memref<8x43xf32, #tpu.memory_space<vmem>>, vector<8x11xf32>
    tpu.vector_store %arg3[%c0_25, %c32], %64 {strides = array<i32>} : memref<8x43xf32, #tpu.memory_space<vmem>>, vector<8x11xf32>,
    return
  }
  func.func @transform_0(%arg0: i32) -> (i32, i32) {
    %c0_i32 = arith.constant 0 : i32
    %c0_i32_0 = arith.constant 0 : i32
    return %arg0, %c0_i32 : i32, i32
  }
  func.func @transform_1(%arg0: i32) -> (i32, i32) {
    %c0_i32 = arith.constant 0 : i32
    %c0_i32_0 = arith.constant 0 : i32
    %c0_i32_1 = arith.constant 0 : i32
    return %c0_i32, %c0_i32_0 : i32, i32
  }
  func.func @transform_2(%arg0: i32) -> (i32, i32) {
    %c0_i32 = arith.constant 0 : i32
    %c0_i32_0 = arith.constant 0 : i32
    return %arg0, %c0_i32 : i32, i32
  }
}

module attributes {stable_mosaic.version = 11 : i64} {
  func.func @kernel(%arg0: i32, %arg1: memref<2x8x5xf32, #tpu.memory_space<vmem>>, %arg2: memref<8x64xf32, #tpu.memory_space<vmem>>, %arg3: memref<184x32xf32, #tpu.memory_space<vmem>>, %arg4: memref<64x64xf32, #tpu.memory_space<vmem>>, %arg5: memref<8x5xf32, #tpu.memory_space<vmem>>) attributes {dimension_semantics = [#tpu.dimension_semantics<parallel>], iteration_bounds = array<i64: 2>, scalar_prefetch = 0 : i64, scratch_operands = 0 : i64, tpu.core_type = #tpu.core_type<tc>, window_params = [{transform_indices = @transform_0, window_bounds = array<i64: 2, 8, 5>}, {transform_indices = @transform_1, window_bounds = array<i64: 8, 64>}, {pipeline_mode = #tpu.pipeline_mode<synchronous>, transform_indices = @transform_2, window_bounds = array<i64: 184, 32>}, {pipeline_mode = #tpu.pipeline_mode<synchronous>, transform_indices = @transform_3, window_bounds = array<i64: 64, 64>}, {transform_indices = @transform_4, window_bounds = array<i64: 8, 5>}]} {
    %c0 = arith.constant 0 : index
    %c0_0 = arith.constant 0 : index
    %0 = vector.load %arg3[%c0, %c0_0] : memref<184x32xf32, #tpu.memory_space<vmem>>, vector<5x32xf32>
    %c8 = arith.constant 8 : index
    %c0_1 = arith.constant 0 : index
    %1 = vector.load %arg3[%c8, %c0_1] : memref<184x32xf32, #tpu.memory_space<vmem>>, vector<32x32xf32>
    %c40 = arith.constant 40 : index
    %c0_2 = arith.constant 0 : index
    %2 = vector.load %arg3[%c40, %c0_2] : memref<184x32xf32, #tpu.memory_space<vmem>>, vector<32x32xf32>
    %c72 = arith.constant 72 : index
    %c0_3 = arith.constant 0 : index
    %3 = vector.load %arg3[%c72, %c0_3] : memref<184x32xf32, #tpu.memory_space<vmem>>, vector<32x32xf32>
    %c104 = arith.constant 104 : index
    %c0_4 = arith.constant 0 : index
    %4 = vector.load %arg3[%c104, %c0_4] : memref<184x32xf32, #tpu.memory_space<vmem>>, vector<32x32xf32>
    %c136 = arith.constant 136 : index
    %c0_5 = arith.constant 0 : index
    %5 = vector.load %arg3[%c136, %c0_5] : memref<184x32xf32, #tpu.memory_space<vmem>>, vector<32x32xf32>
    %c168 = arith.constant 168 : index
    %c0_6 = arith.constant 0 : index
    %6 = vector.load %arg3[%c168, %c0_6] : memref<184x32xf32, #tpu.memory_space<vmem>>, vector<1x32xf32>
    %c169 = arith.constant 169 : index
    %c0_7 = arith.constant 0 : index
    %7 = vector.load %arg3[%c169, %c0_7] : memref<184x32xf32, #tpu.memory_space<vmem>>, vector<1x32xf32>
    %c170 = arith.constant 170 : index
    %c0_8 = arith.constant 0 : index
    %8 = vector.load %arg3[%c170, %c0_8] : memref<184x32xf32, #tpu.memory_space<vmem>>, vector<1x32xf32>
    %c171 = arith.constant 171 : index
    %c0_9 = arith.constant 0 : index
    %9 = vector.load %arg3[%c171, %c0_9] : memref<184x32xf32, #tpu.memory_space<vmem>>, vector<1x32xf32>
    %c172 = arith.constant 172 : index
    %c0_10 = arith.constant 0 : index
    %10 = vector.load %arg3[%c172, %c0_10] : memref<184x32xf32, #tpu.memory_space<vmem>>, vector<1x32xf32>
    %c173 = arith.constant 173 : index
    %c0_11 = arith.constant 0 : index
    %11 = vector.load %arg3[%c173, %c0_11] : memref<184x32xf32, #tpu.memory_space<vmem>>, vector<1x32xf32>
    %c174 = arith.constant 174 : index
    %c0_12 = arith.constant 0 : index
    %12 = vector.load %arg3[%c174, %c0_12] : memref<184x32xf32, #tpu.memory_space<vmem>>, vector<1x32xf32>
    %c175 = arith.constant 175 : index
    %c0_13 = arith.constant 0 : index
    %13 = vector.load %arg3[%c175, %c0_13] : memref<184x32xf32, #tpu.memory_space<vmem>>, vector<1x32xf32>
    %c176 = arith.constant 176 : index
    %c0_14 = arith.constant 0 : index
    %14 = vector.load %arg3[%c176, %c0_14] : memref<184x32xf32, #tpu.memory_space<vmem>>, vector<1x32xf32>
    %c177 = arith.constant 177 : index
    %c0_15 = arith.constant 0 : index
    %15 = vector.load %arg3[%c177, %c0_15] : memref<184x32xf32, #tpu.memory_space<vmem>>, vector<1x32xf32>
    %c0_16 = arith.constant 0 : index
    %c0_17 = arith.constant 0 : index
    %16 = vector.load %arg4[%c0_16, %c0_17] : memref<64x64xf32, #tpu.memory_space<vmem>>, vector<64x64xf32>
    %c0_18 = arith.constant 0 : index
    %c0_19 = arith.constant 0 : index
    %c0_20 = arith.constant 0 : index
    %17 = vector.load %arg1[%c0_18, %c0_19, %c0_20] : memref<2x8x5xf32, #tpu.memory_space<vmem>>, vector<1x8x5xf32>
    %18 = vector.shape_cast %17 : vector<1x8x5xf32> to vector<8x5xf32>
    %c1 = arith.constant 1 : index
    %c0_21 = arith.constant 0 : index
    %c0_22 = arith.constant 0 : index
    %19 = vector.load %arg1[%c1, %c0_21, %c0_22] : memref<2x8x5xf32, #tpu.memory_space<vmem>>, vector<1x8x5xf32>
    %20 = vector.shape_cast %19 : vector<1x8x5xf32> to vector<8x5xf32>
    %21 = tpu.concatenate %18, %20 in 0 : vector<8x5xf32>, vector<8x5xf32> -> vector<16x5xf32>
    %cst = arith.constant dense<0.000000e+00> : vector<16x32xf32>
    %22 = tpu.matmul %21, %0, %cst {dimension_numbers = #tpu.dot_dimension_numbers<[1], [0], [0], [1], [0, 0, 1, 1], [], []>} : vector<16x5xf32>, vector<5x32xf32>, vector<16x32xf32> -> vector<16x32xf32>
    %23 = vector.broadcast %6 : vector<1x32xf32> to vector<16x32xf32>
    %24 = arith.addf %22, %23 : vector<16x32xf32>
    %25 = arith.negf %24 : vector<16x32xf32>
    %26 = math.exp %25 : vector<16x32xf32>
    %cst_23 = arith.constant 1.000000e+00 : f32
    %27 = vector.broadcast %cst_23 : f32 to vector<16x32xf32>
    %28 = arith.addf %27, %26 : vector<16x32xf32>
    %29 = arith.divf %27, %28 : vector<16x32xf32>
    %30 = arith.mulf %24, %29 : vector<16x32xf32>
    %cst_24 = arith.constant dense<0.000000e+00> : vector<16x32xf32>
    %31 = tpu.matmul %30, %1, %cst_24 {dimension_numbers = #tpu.dot_dimension_numbers<[1], [0], [0], [1], [0, 0, 1, 1], [], []>} : vector<16x32xf32>, vector<32x32xf32>, vector<16x32xf32> -> vector<16x32xf32>
    %32 = vector.broadcast %7 : vector<1x32xf32> to vector<16x32xf32>
    %33 = arith.addf %31, %32 : vector<16x32xf32>
    %34 = arith.negf %33 : vector<16x32xf32>
    %35 = math.exp %34 : vector<16x32xf32>
    %cst_25 = arith.constant 1.000000e+00 : f32
    %36 = vector.broadcast %cst_25 : f32 to vector<16x32xf32>
    %37 = arith.addf %36, %35 : vector<16x32xf32>
    %38 = arith.divf %36, %37 : vector<16x32xf32>
    %39 = arith.mulf %33, %38 : vector<16x32xf32>
    %cst_26 = arith.constant dense<0.000000e+00> : vector<16xf32>
    %40 = vector.multi_reduction <add>, %39, %cst_26 [1] : vector<16x32xf32> to vector<16xf32>
    %41 = vector.shape_cast %40 : vector<16xf32> to vector<16x1xf32>
    %cst_27 = arith.constant 3.200000e+01 : f32
    %42 = vector.broadcast %cst_27 : f32 to vector<16x1xf32>
    %43 = arith.divf %41, %42 : vector<16x1xf32>
    %44 = vector.broadcast %43 : vector<16x1xf32> to vector<16x32xf32>
    %45 = arith.subf %39, %44 : vector<16x32xf32>
    %46 = arith.mulf %45, %45 : vector<16x32xf32>
    %cst_28 = arith.constant dense<0.000000e+00> : vector<16xf32>
    %47 = vector.multi_reduction <add>, %46, %cst_28 [1] : vector<16x32xf32> to vector<16xf32>
    %48 = vector.shape_cast %47 : vector<16xf32> to vector<16x1xf32>
    %cst_29 = arith.constant 3.200000e+01 : f32
    %49 = vector.broadcast %cst_29 : f32 to vector<16x1xf32>
    %50 = arith.divf %48, %49 : vector<16x1xf32>
    %51 = vector.broadcast %43 : vector<16x1xf32> to vector<16x32xf32>
    %52 = arith.subf %39, %51 : vector<16x32xf32>
    %cst_30 = arith.constant 9.99999974E-6 : f32
    %53 = vector.broadcast %cst_30 : f32 to vector<16x1xf32>
    %54 = arith.addf %50, %53 : vector<16x1xf32>
    %55 = math.rsqrt %54 : vector<16x1xf32>
    %56 = vector.broadcast %55 : vector<16x1xf32> to vector<16x32xf32>
    %57 = arith.mulf %52, %56 : vector<16x32xf32>
    %58 = vector.broadcast %8 : vector<1x32xf32> to vector<16x32xf32>
    %59 = arith.mulf %57, %58 : vector<16x32xf32>
    %60 = vector.broadcast %9 : vector<1x32xf32> to vector<16x32xf32>
    %61 = arith.addf %59, %60 : vector<16x32xf32>
    %c0_31 = arith.constant 0 : index
    %c0_32 = arith.constant 0 : index
    %62 = vector.load %arg2[%c0_31, %c0_32] : memref<8x64xf32, #tpu.memory_space<vmem>>, vector<8x64xf32>
    %cst_33 = arith.constant dense<0.000000e+00> : vector<8x64xf32>
    %63 = tpu.matmul %62, %16, %cst_33 {dimension_numbers = #tpu.dot_dimension_numbers<[1], [0], [0], [1], [0, 0, 1, 1], [], []>} : vector<8x64xf32>, vector<64x64xf32>, vector<8x64xf32> -> vector<8x64xf32>
    %64 = vector.extract_strided_slice %63 {offsets = [0, 0], sizes = [8, 32], strides = [1, 1]} : vector<8x64xf32> to vector<8x32xf32>
    %65 = vector.extract_strided_slice %63 {offsets = [0, 32], sizes = [8, 32], strides = [1, 1]} : vector<8x64xf32> to vector<8x32xf32>
    %66 = tpu.concatenate %64, %65 in 0 : vector<8x32xf32>, vector<8x32xf32> -> vector<16x32xf32>
    %67 = vector.broadcast %10 : vector<1x32xf32> to vector<16x32xf32>
    %68 = arith.addf %66, %67 : vector<16x32xf32>
    %cst_34 = arith.constant dense<0.000000e+00> : vector<16x32xf32>
    %69 = tpu.matmul %61, %2, %cst_34 {dimension_numbers = #tpu.dot_dimension_numbers<[1], [0], [0], [1], [0, 0, 1, 1], [], []>} : vector<16x32xf32>, vector<32x32xf32>, vector<16x32xf32> -> vector<16x32xf32>
    %70 = arith.addf %68, %69 : vector<16x32xf32>
    %71 = arith.negf %70 : vector<16x32xf32>
    %72 = math.exp %71 : vector<16x32xf32>
    %cst_35 = arith.constant 1.000000e+00 : f32
    %73 = vector.broadcast %cst_35 : f32 to vector<16x32xf32>
    %74 = arith.addf %73, %72 : vector<16x32xf32>
    %75 = arith.divf %73, %74 : vector<16x32xf32>
    %76 = arith.mulf %70, %75 : vector<16x32xf32>
    %cst_36 = arith.constant dense<0.000000e+00> : vector<16x32xf32>
    %77 = tpu.matmul %76, %3, %cst_36 {dimension_numbers = #tpu.dot_dimension_numbers<[1], [0], [0], [1], [0, 0, 1, 1], [], []>} : vector<16x32xf32>, vector<32x32xf32>, vector<16x32xf32> -> vector<16x32xf32>
    %78 = vector.broadcast %11 : vector<1x32xf32> to vector<16x32xf32>
    %79 = arith.addf %77, %78 : vector<16x32xf32>
    %80 = arith.negf %79 : vector<16x32xf32>
    %81 = math.exp %80 : vector<16x32xf32>
    %cst_37 = arith.constant 1.000000e+00 : f32
    %82 = vector.broadcast %cst_37 : f32 to vector<16x32xf32>
    %83 = arith.addf %82, %81 : vector<16x32xf32>
    %84 = arith.divf %82, %83 : vector<16x32xf32>
    %85 = arith.mulf %79, %84 : vector<16x32xf32>
    %86 = arith.addf %61, %85 : vector<16x32xf32>
    %cst_38 = arith.constant dense<0.000000e+00> : vector<16xf32>
    %87 = vector.multi_reduction <add>, %86, %cst_38 [1] : vector<16x32xf32> to vector<16xf32>
    %88 = vector.shape_cast %87 : vector<16xf32> to vector<16x1xf32>
    %cst_39 = arith.constant 3.200000e+01 : f32
    %89 = vector.broadcast %cst_39 : f32 to vector<16x1xf32>
    %90 = arith.divf %88, %89 : vector<16x1xf32>
    %91 = vector.broadcast %90 : vector<16x1xf32> to vector<16x32xf32>
    %92 = arith.subf %86, %91 : vector<16x32xf32>
    %93 = arith.mulf %92, %92 : vector<16x32xf32>
    %cst_40 = arith.constant dense<0.000000e+00> : vector<16xf32>
    %94 = vector.multi_reduction <add>, %93, %cst_40 [1] : vector<16x32xf32> to vector<16xf32>
    %95 = vector.shape_cast %94 : vector<16xf32> to vector<16x1xf32>
    %cst_41 = arith.constant 3.200000e+01 : f32
    %96 = vector.broadcast %cst_41 : f32 to vector<16x1xf32>
    %97 = arith.divf %95, %96 : vector<16x1xf32>
    %98 = vector.broadcast %90 : vector<16x1xf32> to vector<16x32xf32>
    %99 = arith.subf %86, %98 : vector<16x32xf32>
    %cst_42 = arith.constant 9.99999974E-6 : f32
    %100 = vector.broadcast %cst_42 : f32 to vector<16x1xf32>
    %101 = arith.addf %97, %100 : vector<16x1xf32>
    %102 = math.rsqrt %101 : vector<16x1xf32>
    %103 = vector.broadcast %102 : vector<16x1xf32> to vector<16x32xf32>
    %104 = arith.mulf %99, %103 : vector<16x32xf32>
    %105 = vector.broadcast %12 : vector<1x32xf32> to vector<16x32xf32>
    %106 = arith.mulf %104, %105 : vector<16x32xf32>
    %107 = vector.broadcast %13 : vector<1x32xf32> to vector<16x32xf32>
    %108 = arith.addf %106, %107 : vector<16x32xf32>
    %cst_43 = arith.constant dense<0.000000e+00> : vector<16x32xf32>
    %109 = tpu.matmul %108, %2, %cst_43 {dimension_numbers = #tpu.dot_dimension_numbers<[1], [0], [0], [1], [0, 0, 1, 1], [], []>} : vector<16x32xf32>, vector<32x32xf32>, vector<16x32xf32> -> vector<16x32xf32>
    %110 = arith.addf %68, %109 : vector<16x32xf32>
    %111 = arith.negf %110 : vector<16x32xf32>
    %112 = math.exp %111 : vector<16x32xf32>
    %cst_44 = arith.constant 1.000000e+00 : f32
    %113 = vector.broadcast %cst_44 : f32 to vector<16x32xf32>
    %114 = arith.addf %113, %112 : vector<16x32xf32>
    %115 = arith.divf %113, %114 : vector<16x32xf32>
    %116 = arith.mulf %110, %115 : vector<16x32xf32>
    %cst_45 = arith.constant dense<0.000000e+00> : vector<16x32xf32>
    %117 = tpu.matmul %116, %3, %cst_45 {dimension_numbers = #tpu.dot_dimension_numbers<[1], [0], [0], [1], [0, 0, 1, 1], [], []>} : vector<16x32xf32>, vector<32x32xf32>, vector<16x32xf32> -> vector<16x32xf32>
    %118 = vector.broadcast %11 : vector<1x32xf32> to vector<16x32xf32>
    %119 = arith.addf %117, %118 : vector<16x32xf32>
    %120 = arith.negf %119 : vector<16x32xf32>
    %121 = math.exp %120 : vector<16x32xf32>
    %cst_46 = arith.constant 1.000000e+00 : f32
    %122 = vector.broadcast %cst_46 : f32 to vector<16x32xf32>
    %123 = arith.addf %122, %121 : vector<16x32xf32>
    %124 = arith.divf %122, %123 : vector<16x32xf32>
    %125 = arith.mulf %119, %124 : vector<16x32xf32>
    %126 = arith.addf %108, %125 : vector<16x32xf32>
    %cst_47 = arith.constant dense<0.000000e+00> : vector<16xf32>
    %127 = vector.multi_reduction <add>, %126, %cst_47 [1] : vector<16x32xf32> to vector<16xf32>
    %128 = vector.shape_cast %127 : vector<16xf32> to vector<16x1xf32>
    %cst_48 = arith.constant 3.200000e+01 : f32
    %129 = vector.broadcast %cst_48 : f32 to vector<16x1xf32>
    %130 = arith.divf %128, %129 : vector<16x1xf32>
    %131 = vector.broadcast %130 : vector<16x1xf32> to vector<16x32xf32>
    %132 = arith.subf %126, %131 : vector<16x32xf32>
    %133 = arith.mulf %132, %132 : vector<16x32xf32>
    %cst_49 = arith.constant dense<0.000000e+00> : vector<16xf32>
    %134 = vector.multi_reduction <add>, %133, %cst_49 [1] : vector<16x32xf32> to vector<16xf32>
    %135 = vector.shape_cast %134 : vector<16xf32> to vector<16x1xf32>
    %cst_50 = arith.constant 3.200000e+01 : f32
    %136 = vector.broadcast %cst_50 : f32 to vector<16x1xf32>
    %137 = arith.divf %135, %136 : vector<16x1xf32>
    %138 = vector.broadcast %130 : vector<16x1xf32> to vector<16x32xf32>
    %139 = arith.subf %126, %138 : vector<16x32xf32>
    %cst_51 = arith.constant 9.99999974E-6 : f32
    %140 = vector.broadcast %cst_51 : f32 to vector<16x1xf32>
    %141 = arith.addf %137, %140 : vector<16x1xf32>
    %142 = math.rsqrt %141 : vector<16x1xf32>
    %143 = vector.broadcast %142 : vector<16x1xf32> to vector<16x32xf32>
    %144 = arith.mulf %139, %143 : vector<16x32xf32>
    %145 = vector.broadcast %12 : vector<1x32xf32> to vector<16x32xf32>
    %146 = arith.mulf %144, %145 : vector<16x32xf32>
    %147 = vector.broadcast %13 : vector<1x32xf32> to vector<16x32xf32>
    %148 = arith.addf %146, %147 : vector<16x32xf32>
    %149 = vector.extract_strided_slice %148 {offsets = [0, 0], sizes = [8, 32], strides = [1, 1]} : vector<16x32xf32> to vector<8x32xf32>
    %150 = vector.extract_strided_slice %148 {offsets = [8, 0], sizes = [8, 32], strides = [1, 1]} : vector<16x32xf32> to vector<8x32xf32>
    %151 = arith.addf %149, %150 : vector<8x32xf32>
    %cst_52 = arith.constant dense<0.000000e+00> : vector<8x32xf32>
    %152 = tpu.matmul %151, %4, %cst_52 {dimension_numbers = #tpu.dot_dimension_numbers<[1], [0], [0], [1], [0, 0, 1, 1], [], []>} : vector<8x32xf32>, vector<32x32xf32>, vector<8x32xf32> -> vector<8x32xf32>
    %153 = vector.broadcast %14 : vector<1x32xf32> to vector<8x32xf32>
    %154 = arith.addf %152, %153 : vector<8x32xf32>
    %155 = arith.negf %154 : vector<8x32xf32>
    %156 = math.exp %155 : vector<8x32xf32>
    %cst_53 = arith.constant 1.000000e+00 : f32
    %157 = vector.broadcast %cst_53 : f32 to vector<8x32xf32>
    %158 = arith.addf %157, %156 : vector<8x32xf32>
    %159 = arith.divf %157, %158 : vector<8x32xf32>
    %160 = arith.mulf %154, %159 : vector<8x32xf32>
    %cst_54 = arith.constant dense<0.000000e+00> : vector<8x32xf32>
    %161 = tpu.matmul %160, %5, %cst_54 {dimension_numbers = #tpu.dot_dimension_numbers<[1], [0], [0], [1], [0, 0, 1, 1], [], []>} : vector<8x32xf32>, vector<32x32xf32>, vector<8x32xf32> -> vector<8x32xf32>
    %162 = vector.broadcast %15 : vector<1x32xf32> to vector<8x32xf32>
    %163 = arith.addf %161, %162 : vector<8x32xf32>
    %164 = vector.extract_strided_slice %163 {offsets = [0, 0], sizes = [8, 5], strides = [1, 1]} : vector<8x32xf32> to vector<8x5xf32>
    %c0_55 = arith.constant 0 : index
    %c0_56 = arith.constant 0 : index
    %165 = vector.load %arg5[%c0_55, %c0_56] : memref<8x5xf32, #tpu.memory_space<vmem>>, vector<8x5xf32>
    tpu.vector_store %arg5[%c0_55, %c0_56], %164 {strides = array<i32>} : memref<8x5xf32, #tpu.memory_space<vmem>>, vector<8x5xf32>,
    return
  }
  func.func @transform_0(%arg0: i32) -> (i32, i32, i32) {
    %c0_i32 = arith.constant 0 : i32
    %c0_i32_0 = arith.constant 0 : i32
    %c0_i32_1 = arith.constant 0 : i32
    return %c0_i32, %arg0, %c0_i32_0 : i32, i32, i32
  }
  func.func @transform_1(%arg0: i32) -> (i32, i32) {
    %c0_i32 = arith.constant 0 : i32
    %c0_i32_0 = arith.constant 0 : i32
    return %arg0, %c0_i32 : i32, i32
  }
  func.func @transform_2(%arg0: i32) -> (i32, i32) {
    %c0_i32 = arith.constant 0 : i32
    %c0_i32_0 = arith.constant 0 : i32
    %c0_i32_1 = arith.constant 0 : i32
    return %c0_i32, %c0_i32_0 : i32, i32
  }
  func.func @transform_3(%arg0: i32) -> (i32, i32) {
    %c0_i32 = arith.constant 0 : i32
    %c0_i32_0 = arith.constant 0 : i32
    %c0_i32_1 = arith.constant 0 : i32
    return %c0_i32, %c0_i32_0 : i32, i32
  }
  func.func @transform_4(%arg0: i32) -> (i32, i32) {
    %c0_i32 = arith.constant 0 : i32
    %c0_i32_0 = arith.constant 0 : i32
    return %arg0, %c0_i32 : i32, i32
  }
}

</mosaic_0001>

<llo_original>
// kernel: endpoint_vector_field_forward.2
$region0: #{endpoint_vector_field_forward.2}
  #allocation0 [shape = 'u32[]', space=smem, size = 0x4, offset = 0x4, fixed_abs, tag = 'smem constant byte address 0x4 - core index']
  #allocation1 [shape = 'u32[144,128]{1,0:T(1,128)}', space=vmem, size = 0x12000, scoped, tag = 'internal scratch']
  %s0 = inlined_call_operand.vmem [shape: f32[16,12], index: 0, kind: input, shape index: {}]
  %s1 = inlined_call_operand.vmem [shape: f32[120,32], index: 1, kind: input, shape index: {}]
  %s2 = inlined_call_operand.vmem [shape: f32[16,43], index: 2, kind: output, shape index: {}]
  %s3 = sld [smem:[#allocation0]]
  $region41: #{endpoint_vector_field_forward.2} parent=0
    _
  %s5 = ssub.s32 1, %s3
  %s6 = scalar_select 0, %s5, %s3
  loop: start=0, step=1, limit=4
  $region2: #{endpoint_vector_field_forward.2} parent=0 // loop_pre_header
    _
  $region3: #{endpoint_vector_field_forward.2} parent=0 // loop_header
    %s8 = sphi 0, %s12
    %p9 = scmp.ge.s32.totalorder %s8, 4
    %s18 = sphi 0, %s20
    %s21 = sphi 0, %s18
    %s22 = sphi 0, %s21
    %s38 = sphi 0, %s22
    %s42 = sphi 0, %s42
    %s44 = sphi 0, %s42
    %s45 = sphi 0, %s44
    %s59 = sphi 0, %s45
    %s65 = sphi 0, %s67
    %s68 = sphi 0, %s65
    %s69 = sphi 0, %s68
    %s85 = sphi 0, %s69
  $region4: #{endpoint_vector_field_forward.2} parent=0 // loop_header_branch
    %11 = sbr.rel (%p9) target = $region8
  $region5: #{endpoint_vector_field_forward.2} parent=0 // loop_body
    %s13 = ssub.s32 %s8, 1
    %s14 = ssub.s32 %s8, 2
    %s15 = sadd.s32 %s8, 1
    %s16 = ssub.s32 %s8, %s15
    %p17 = scmp.eq.s32.totalorder %s16, 0
    %s19 = sadd.s32 %s18, 1
    %s20 = scalar_select %p17, %s18, %s19
    %p23 = pneg %p17
    %p24 = scmp.eq.s32.totalorder %s8, 1
    %p25 = por %p23, %p24
    %p26 = scmp.ne.s32.totalorder %s18, %s21
    %p27 = scmp.eq.s32.totalorder %s8, 0
    %p28 = por %p26, %p27
    %p29 = scmp.ne.s32.totalorder %s18, %s21
    %p30 = scmp.eq.s32.totalorder %s13, 1
    %p31 = por %p29, %p30
    %p32 = scmp.ne.s32.totalorder %s21, %s22
    %p33 = scmp.eq.s32.totalorder %s13, 0
    %p34 = por %p32, %p33
    %p35 = scmp.ne.s32.totalorder %s21, %s22
    %p36 = scmp.eq.s32.totalorder %s14, 1
    %p37 = por %p35, %p36
    %p39 = scmp.ne.s32.totalorder %s22, %s38
    %p40 = scmp.eq.s32.totalorder %s14, 0
    %p41 = por %p39, %p40
    %s43 = sadd.s32 %s42, 1
    %p46 = scmp.eq.s32.totalorder %s8, 1
    %p47 = scmp.ne.s32.totalorder %s42, %s44
    %p48 = scmp.eq.s32.totalorder %s8, 0
    %p49 = por %p47, %p48
    %p50 = scmp.ne.s32.totalorder %s42, %s44
    %p51 = scmp.eq.s32.totalorder %s13, 1
    %p52 = por %p50, %p51
    %p53 = scmp.ne.s32.totalorder %s44, %s45
    %p54 = scmp.eq.s32.totalorder %s13, 0
    %p55 = por %p53, %p54
    %p56 = scmp.ne.s32.totalorder %s44, %s45
    %p57 = scmp.eq.s32.totalorder %s14, 1
    %p58 = por %p56, %p57
    %p60 = scmp.ne.s32.totalorder %s45, %s59
    %p61 = scmp.eq.s32.totalorder %s14, 0
    %p62 = por %p60, %p61
    %s63 = ssub.s32 %s8, %s15
    %p64 = scmp.eq.s32.totalorder %s63, 0
    %s66 = sadd.s32 %s65, 1
    %s67 = scalar_select %p64, %s65, %s66
    %p70 = pneg %p64
    %p71 = scmp.eq.s32.totalorder %s8, 1
    %p72 = por %p70, %p71
    %p73 = scmp.ne.s32.totalorder %s65, %s68
    %p74 = scmp.eq.s32.totalorder %s8, 0
    %p75 = por %p73, %p74
    %p76 = scmp.ne.s32.totalorder %s65, %s68
    %p77 = scmp.eq.s32.totalorder %s13, 1
    %p78 = por %p76, %p77
    %p79 = scmp.ne.s32.totalorder %s68, %s69
    %p80 = scmp.eq.s32.totalorder %s13, 0
    %p81 = por %p79, %p80
    %p82 = scmp.ne.s32.totalorder %s68, %s69
    %p83 = scmp.eq.s32.totalorder %s14, 1
    %p84 = por %p82, %p83
    %p86 = scmp.ne.s32.totalorder %s69, %s85
    %p87 = scmp.eq.s32.totalorder %s14, 0
    %p88 = por %p86, %p87
    %p89 = scmp.le.s32.totalorder 1, %s8
    %p90 = scmp.lt.s32.totalorder %s8, 3
    %p91 = pnand %p89, %p90
    %p92 = pneg %p91
    // Predicated region
    $region9: #{endpoint_vector_field_forward.2} parent=5 // pred_check
      _
    $region10: #{endpoint_vector_field_forward.2} parent=5 // pred_check_branch
      %94 = sbr.rel (%p91) target = $region12
    $region11: #{endpoint_vector_field_forward.2} parent=5 // pred_region
      %s95 = ssub.s32 %s8, 1
      // Predicated region
      $region13: #{endpoint_vector_field_forward.2} parent=11 // pred_check
        %p96 = pneg %p55
      $region14: #{endpoint_vector_field_forward.2} parent=11 // pred_check_branch
        %98 = sbr.rel (%p96) target = $region16
      $region15: #{endpoint_vector_field_forward.2} parent=11 // pred_region
        _
      $region16: #{endpoint_vector_field_forward.2} parent=11 // pred_fallthru
        _
    $region12: #{endpoint_vector_field_forward.2} parent=5 // pred_fallthru
      _
    %p99 = scmp.lt.s32.totalorder %s8, 2
    // Predicated region
    $region17: #{endpoint_vector_field_forward.2} parent=5 // pred_check
      %p100 = pneg %p99
    $region18: #{endpoint_vector_field_forward.2} parent=5 // pred_check_branch
      %102 = sbr.rel (%p100) target = $region20
    $region19: #{endpoint_vector_field_forward.2} parent=5 // pred_region
      // Predicated region
      $region21: #{endpoint_vector_field_forward.2} parent=19 // pred_check
        %p103 = pneg %p28
      $region22: #{endpoint_vector_field_forward.2} parent=19 // pred_check_branch
        %105 = sbr.rel (%p103) target = $region24
      $region23: #{endpoint_vector_field_forward.2} parent=19 // pred_region
        %p106 = scmp.lt.s32.totalorder %s8, 1
        %s107 = scalar_select %p106, %s8, 1
        %s108 = smul.addr %s107, 8
        %s109 = scalar_lea.vmem %s0, %s108
      $region24: #{endpoint_vector_field_forward.2} parent=19 // pred_fallthru
        _
    $region20: #{endpoint_vector_field_forward.2} parent=5 // pred_fallthru
      _
    %p110 = scmp.le.s32.totalorder 1, %s8
    %p111 = scmp.lt.s32.totalorder %s8, 3
    %p112 = pnand %p110, %p111
    %p113 = pneg %p112
    // Predicated region
    $region25: #{endpoint_vector_field_forward.2} parent=5 // pred_check
      _
    $region26: #{endpoint_vector_field_forward.2} parent=5 // pred_check_branch
      %115 = sbr.rel (%p112) target = $region28
    $region27: #{endpoint_vector_field_forward.2} parent=5 // pred_region
      %s116 = ssub.s32 %s8, 1
      %p117 = scmp.lt.s32.totalorder %s13, 1
      %s118 = scalar_select %p117, %s13, 1
      %s119 = smul.addr %s118, 8
      %s120 = scalar_lea.vmem %s0, %s119
      %p121 = pneg %p34
      %p122 = pneg %p31
      %p123 = pneg %p55
      %p124 = pneg %p52
      %p125 = pneg %p81
      %p126 = pneg %p78
      %p127 = scmp.lt.s32.totalorder %s13, 1
      %s128 = scalar_select %p127, %s13, 1
      %s129 = smul.addr %s128, 8
      %s130 = scalar_lea.vmem %s2, %s129
      %p131 = scmp.lt.s32.totalorder %s13, 1
      %s132 = scalar_select %p131, %s13, 1
      %s133 = smul.addr %s132, 8
      %s134 = scalar_lea.vmem %s0, %s133
      %p135 = scmp.lt.s32.totalorder %s13, 1
      %s136 = scalar_select %p135, %s13, 1
      %s137 = smul.addr %s136, 8
      %s138 = scalar_lea.vmem %s2, %s137
      %v139 = vld [vmem:[%s1] sm:$0xff]
      %v140 = vld [vmem:[%s1 + $0x8] sm:$0xf]
      %v141 = vld [vmem:[%s1 + $0x10] sm:$0xff]
      %v142 = vld [vmem:[%s1 + $0x18] sm:$0xff]
      %v143 = vld [vmem:[%s1 + $0x20] sm:$0xff]
      %v144 = vld [vmem:[%s1 + $0x28] sm:$0xff]
      %v145 = vld [vmem:[%s1 + $0x30] sm:$0xff]
      %v146 = vld [vmem:[%s1 + $0x38] sm:$0xff]
      %v147 = vld [vmem:[%s1 + $0x40] sm:$0xff]
      %v148 = vld [vmem:[%s1 + $0x48] sm:$0xff]
      %v149 = vld [vmem:[%s1 + $0x50] sm:$0xff]
      %v150 = vld [vmem:[%s1 + $0x58] sm:$0xff]
      %v151 = vld [vmem:[%s1 + $0x60] sm:$0xff]
      %v152 = vld [vmem:[%s1 + $0x68] sm:$0xff]
      %v153 = vld [vmem:[%s1 + $0x70] sm:$0x1]
      %v154 = vld [vmem:[%s1 + $0x71] sm:$0x1]
      %v155 = vld [vmem:[%s1 + $0x72] sm:$0x1]
      %v156 = vld [vmem:[%s1 + $0x73] sm:$0x1]
      %v157 = vld [vmem:[%s1 + $0x74] sm:$0x1]
      %v158 = vld [vmem:[%s1 + $0x75] sm:$0x1]
      %v159 = vld [vmem:[%s134] sm:$0xff]
      %v160 = vlaneseq
      %v161 = vshrl.u32 %v160, 7
      %v162 = vsub.s32 0, %v161
      %v163 = vrot.slane %v153, %v162
      %vm164 = vcmask 97280
      %v166 = vsel %vm164, %v159, 0
      %vm168 = vcmask 1043456
      %v170 = vsel %vm168, %v140, 0
      %172 = vmatprep.subr.mxu0 0.0
      %173 = vmatpush1.msra.mxu0 %v139
      %174 = vmatprep.subr.mxu0 0.0
      %175 = vmatpush1.msra.mxu0 %v170
      %176 = vmatprep.subr.mxu0 0.0
      %177 = vmatpush1.msra.mxu0 0.0
      %178 = vmatprep.subr.mxu0 0.0
      %179 = vmatpush1.msra.mxu0 0.0
      %180 = vmatprep.subr.mxu0 0.0
      %181 = vmatpush1.msra.mxu0 0.0
      %182 = vmatprep.subr.mxu0 0.0
      %183 = vmatpush1.msra.mxu0 0.0
      %184 = vmatprep.subr.mxu0 0.0
      %185 = vmatpush1.msra.mxu0 0.0
      %186 = vmatprep.subr.mxu0 0.0
      %187 = vmatpush1.msra.mxu0 0.0
      %188 = vmatprep.subr.mxu0 0.0
      %189 = vmatpush1.msra.mxu0 0.0
      %190 = vmatprep.subr.mxu0 0.0
      %191 = vmatpush1.msra.mxu0 0.0
      %192 = vmatprep.subr.mxu0 0.0
      %193 = vmatpush1.msra.mxu0 0.0
      %194 = vmatprep.subr.mxu0 0.0
      %195 = vmatpush1.msra.mxu0 0.0
      %196 = vmatprep.subr.mxu0 0.0
      %197 = vmatpush1.msra.mxu0 0.0
      %198 = vmatprep.subr.mxu0 0.0
      %199 = vmatpush1.msra.mxu0 0.0
      %200 = vmatprep.subr.mxu0 0.0
      %201 = vmatpush1.msra.mxu0 0.0
      %202 = vmatprep.subr.mxu0 0.0
      %203 = vmatpush1.msra.mxu0 0.0
      %204 = vmatprep.subr.mxu0 0.0
      %205 = vmatpush1.msra.mxu0 0.0
      %206 = vmatprep.subr.mxu0 0.0
      %207 = vmatpush1.msra.mxu0 0.0
      %208 = vmatprep.subr.mxu0 0.0
      %209 = vmatpush1.msra.mxu0 0.0
      %210 = vmatprep.subr.mxu0 0.0
      %211 = vmatpush1.msra.mxu0 0.0
      %212 = vmatprep.subr.mxu0 0.0
      %213 = vmatpush1.msra.mxu0 0.0
      %214 = vmatprep.subr.mxu0 0.0
      %215 = vmatpush1.msra.mxu0 0.0
      %216 = vmatprep.subr.mxu0 0.0
      %217 = vmatpush1.msra.mxu0 0.0
      %218 = vmatprep.subr.mxu0 0.0
      %219 = vmatpush1.msra.mxu0 0.0
      %220 = vmatprep.subr.mxu0 0.0
      %221 = vmatpush1.msra.mxu0 0.0
      %222 = vmatprep.subr.mxu0 0.0
      %223 = vmatpush1.msra.mxu0 0.0
      %224 = vmatprep.subr.mxu0 0.0
      %225 = vmatpush1.msra.mxu0 0.0
      %226 = vmatprep.subr.mxu0 0.0
      %227 = vmatpush1.msra.mxu0 0.0
      %228 = vmatprep.subr.mxu0 0.0
      %229 = vmatpush1.msra.mxu0 0.0
      %230 = vmatprep.subr.mxu0 0.0
      %231 = vmatpush1.msra.mxu0 0.0
      %232 = vmatprep.subr.mxu0 0.0
      %233 = vmatpush1.msra.mxu0 0.0
      %234 = vmatprep.subr.mxu0 0.0
      %235 = vmatpush1.msra.mxu0 0.0
      %236 = vmatprep.mubr.f32.mxu0 0.0
      %237 = vmatmul.mubr.f32.gmra.mrb[0].mxu0 %v166
      %v238 = vpop.f32.mrb[0].mxu0
      %v239 = vadd.f32 %v163, %v238
      %v240 = vpop.f32.mrb[0].mxu0
      %241 = vdwg.mxu0
      %v242 = vxor.u32 %v239, 2147483648
      %v243 = vmul.f32 %v242, 1.442695
      %v244 = vpow.pop %v243
      %v245 = vadd.f32 %v244, 1.0
      %v246 = vrcp.pop %v245
      %v247 = vmul.f32 1.0, %v246
      %v248 = vmul.f32 %v239, %v247
      %v249 = vlaneseq
      %v250 = vshrl.u32 %v249, 7
      %v251 = vsub.s32 0, %v250
      %v252 = vrot.slane %v154, %v251
      %vm253 = vcmask 261120
      %v255 = vsel %vm253, %v248, 0
      %257 = vmatprep.subr.mxu0 0.0
      %258 = vmatpush1.msra.mxu0 %v141
      %259 = vmatprep.subr.mxu0 0.0
      %260 = vmatpush1.msra.mxu0 %v142
      %261 = vmatprep.subr.mxu0 0.0
      %262 = vmatpush1.msra.mxu0 %v143
      %263 = vmatprep.subr.mxu0 0.0
      %264 = vmatpush1.msra.mxu0 %v144
      %265 = vmatprep.subr.mxu0 0.0
      %266 = vmatpush1.msra.mxu0 0.0
      %267 = vmatprep.subr.mxu0 0.0
      %268 = vmatpush1.msra.mxu0 0.0
      %269 = vmatprep.subr.mxu0 0.0
      %270 = vmatpush1.msra.mxu0 0.0
      %271 = vmatprep.subr.mxu0 0.0
      %272 = vmatpush1.msra.mxu0 0.0
      %273 = vmatprep.subr.mxu0 0.0
      %274 = vmatpush1.msra.mxu0 0.0
      %275 = vmatprep.subr.mxu0 0.0
      %276 = vmatpush1.msra.mxu0 0.0
      %277 = vmatprep.subr.mxu0 0.0
      %278 = vmatpush1.msra.mxu0 0.0
      %279 = vmatprep.subr.mxu0 0.0
      %280 = vmatpush1.msra.mxu0 0.0
      %281 = vmatprep.subr.mxu0 0.0
      %282 = vmatpush1.msra.mxu0 0.0
      %283 = vmatprep.subr.mxu0 0.0
      %284 = vmatpush1.msra.mxu0 0.0
      %285 = vmatprep.subr.mxu0 0.0
      %286 = vmatpush1.msra.mxu0 0.0
      %287 = vmatprep.subr.mxu0 0.0
      %288 = vmatpush1.msra.mxu0 0.0
      %289 = vmatprep.subr.mxu0 0.0
      %290 = vmatpush1.msra.mxu0 0.0
      %291 = vmatprep.subr.mxu0 0.0
      %292 = vmatpush1.msra.mxu0 0.0
      %293 = vmatprep.subr.mxu0 0.0
      %294 = vmatpush1.msra.mxu0 0.0
      %295 = vmatprep.subr.mxu0 0.0
      %296 = vmatpush1.msra.mxu0 0.0
      %297 = vmatprep.subr.mxu0 0.0
      %298 = vmatpush1.msra.mxu0 0.0
      %299 = vmatprep.subr.mxu0 0.0
      %300 = vmatpush1.msra.mxu0 0.0
      %301 = vmatprep.subr.mxu0 0.0
      %302 = vmatpush1.msra.mxu0 0.0
      %303 = vmatprep.subr.mxu0 0.0
      %304 = vmatpush1.msra.mxu0 0.0
      %305 = vmatprep.subr.mxu0 0.0
      %306 = vmatpush1.msra.mxu0 0.0
      %307 = vmatprep.subr.mxu0 0.0
      %308 = vmatpush1.msra.mxu0 0.0
      %309 = vmatprep.subr.mxu0 0.0
      %310 = vmatpush1.msra.mxu0 0.0
      %311 = vmatprep.subr.mxu0 0.0
      %312 = vmatpush1.msra.mxu0 0.0
      %313 = vmatprep.subr.mxu0 0.0
      %314 = vmatpush1.msra.mxu0 0.0
      %315 = vmatprep.subr.mxu0 0.0
      %316 = vmatpush1.msra.mxu0 0.0
      %317 = vmatprep.subr.mxu0 0.0
      %318 = vmatpush1.msra.mxu0 0.0
      %319 = vmatprep.subr.mxu0 0.0
      %320 = vmatpush1.msra.mxu0 0.0
      %321 = vmatprep.mubr.f32.mxu0 0.0
      %322 = vmatmul.mubr.f32.gmra.mrb[0].mxu0 %v255
      %v323 = vpop.f32.mrb[0].mxu0
      %v324 = vadd.f32 %v252, %v323
      %v325 = vpop.f32.mrb[0].mxu0
      %326 = vdwg.mxu0
      %v327 = vxor.u32 %v324, 2147483648
      %v328 = vmul.f32 %v327, 1.442695
      %v329 = vpow.pop %v328
      %v330 = vadd.f32 %v329, 1.0
      %v331 = vrcp.pop %v330
      %v332 = vmul.f32 1.0, %v331
      %v333 = vmul.f32 %v324, %v332
      %v334 = vsel %vm253, %v333, 0.0
      %335 = vadd.xlane.f32.xlu0 %v334
      %v336 = vpop.xlane.xlu0 %335
      %v337 = vrcp.pop 32.0
      %v338 = vmul.f32 %v336, %v337
      %v339 = vsub.f32 %v333, %v338
      %v340 = vmul.f32 %v339, %v339
      %v341 = vsel %vm253, %v340, 0.0
      %342 = vadd.xlane.f32.xlu0 %v341
      %v343 = vpop.xlane.xlu0 %342
      %v344 = vmul.f32 %v343, %v337
      %v345 = vadd.f32 %v344, 1e-05
      %v346 = vrsqrt.pop %v345
      %v347 = vmul.f32 %v339, %v346
      %v348 = vlaneseq
      %v349 = vshrl.u32 %v348, 7
      %v350 = vsub.s32 0, %v349
      %v351 = vrot.slane %v155, %v350
      %v352 = vmul.f32 %v347, %v351
      %v353 = vlaneseq
      %v354 = vshrl.u32 %v353, 7
      %v355 = vsub.s32 0, %v354
      %v356 = vrot.slane %v156, %v355
      %v357 = vadd.f32 %v352, %v356
      %v358 = vlaneseq
      %v359 = vshrl.u32 %v358, 7
      %v360 = vsub.s32 0, %v359
      %v361 = vrot.slane %v157, %v360
      %v363 = vsel %vm253, %v357, 0
      %365 = vmatprep.subr.mxu0 0.0
      %366 = vmatpush1.msra.mxu0 %v145
      %367 = vmatprep.subr.mxu0 0.0
      %368 = vmatpush1.msra.mxu0 %v146
      %369 = vmatprep.subr.mxu0 0.0
      %370 = vmatpush1.msra.mxu0 %v147
      %371 = vmatprep.subr.mxu0 0.0
      %372 = vmatpush1.msra.mxu0 %v148
      %373 = vmatprep.subr.mxu0 0.0
      %374 = vmatpush1.msra.mxu0 0.0
      %375 = vmatprep.subr.mxu0 0.0
      %376 = vmatpush1.msra.mxu0 0.0
      %377 = vmatprep.subr.mxu0 0.0
      %378 = vmatpush1.msra.mxu0 0.0
      %379 = vmatprep.subr.mxu0 0.0
      %380 = vmatpush1.msra.mxu0 0.0
      %381 = vmatprep.subr.mxu0 0.0
      %382 = vmatpush1.msra.mxu0 0.0
      %383 = vmatprep.subr.mxu0 0.0
      %384 = vmatpush1.msra.mxu0 0.0
      %385 = vmatprep.subr.mxu0 0.0
      %386 = vmatpush1.msra.mxu0 0.0
      %387 = vmatprep.subr.mxu0 0.0
      %388 = vmatpush1.msra.mxu0 0.0
      %389 = vmatprep.subr.mxu0 0.0
      %390 = vmatpush1.msra.mxu0 0.0
      %391 = vmatprep.subr.mxu0 0.0
      %392 = vmatpush1.msra.mxu0 0.0
      %393 = vmatprep.subr.mxu0 0.0
      %394 = vmatpush1.msra.mxu0 0.0
      %395 = vmatprep.subr.mxu0 0.0
      %396 = vmatpush1.msra.mxu0 0.0
      %397 = vmatprep.subr.mxu0 0.0
      %398 = vmatpush1.msra.mxu0 0.0
      %399 = vmatprep.subr.mxu0 0.0
      %400 = vmatpush1.msra.mxu0 0.0
      %401 = vmatprep.subr.mxu0 0.0
      %402 = vmatpush1.msra.mxu0 0.0
      %403 = vmatprep.subr.mxu0 0.0
      %404 = vmatpush1.msra.mxu0 0.0
      %405 = vmatprep.subr.mxu0 0.0
      %406 = vmatpush1.msra.mxu0 0.0
      %407 = vmatprep.subr.mxu0 0.0
      %408 = vmatpush1.msra.mxu0 0.0
      %409 = vmatprep.subr.mxu0 0.0
      %410 = vmatpush1.msra.mxu0 0.0
      %411 = vmatprep.subr.mxu0 0.0
      %412 = vmatpush1.msra.mxu0 0.0
      %413 = vmatprep.subr.mxu0 0.0
      %414 = vmatpush1.msra.mxu0 0.0
      %415 = vmatprep.subr.mxu0 0.0
      %416 = vmatpush1.msra.mxu0 0.0
      %417 = vmatprep.subr.mxu0 0.0
      %418 = vmatpush1.msra.mxu0 0.0
      %419 = vmatprep.subr.mxu0 0.0
      %420 = vmatpush1.msra.mxu0 0.0
      %421 = vmatprep.subr.mxu0 0.0
      %422 = vmatpush1.msra.mxu0 0.0
      %423 = vmatprep.subr.mxu0 0.0
      %424 = vmatpush1.msra.mxu0 0.0
      %425 = vmatprep.subr.mxu0 0.0
      %426 = vmatpush1.msra.mxu0 0.0
      %427 = vmatprep.subr.mxu0 0.0
      %428 = vmatpush1.msra.mxu0 0.0
      %429 = vmatprep.mubr.f32.mxu0 0.0
      %430 = vmatmul.mubr.f32.gmra.mrb[0].mxu0 %v363
      %v431 = vpop.f32.mrb[0].mxu0
      %v432 = vadd.f32 %v361, %v431
      %v433 = vpop.f32.mrb[0].mxu0
      %434 = vdwg.mxu0
      %v435 = vxor.u32 %v432, 2147483648
      %v436 = vmul.f32 %v435, 1.442695
      %v437 = vpow.pop %v436
      %v438 = vadd.f32 %v437, 1.0
      %v439 = vrcp.pop %v438
      %v440 = vmul.f32 1.0, %v439
      %v441 = vmul.f32 %v432, %v440
      %v442 = vlaneseq
      %v443 = vshrl.u32 %v442, 7
      %v444 = vsub.s32 0, %v443
      %v445 = vrot.slane %v158, %v444
      %v447 = vsel %vm253, %v441, 0
      %449 = vmatprep.subr.mxu0 0.0
      %450 = vmatpush1.msra.mxu0 %v149
      %451 = vmatprep.subr.mxu0 0.0
      %452 = vmatpush1.msra.mxu0 %v150
      %453 = vmatprep.subr.mxu0 0.0
      %454 = vmatpush1.msra.mxu0 %v151
      %455 = vmatprep.subr.mxu0 0.0
      %456 = vmatpush1.msra.mxu0 %v152
      %457 = vmatprep.subr.mxu0 0.0
      %458 = vmatpush1.msra.mxu0 0.0
      %459 = vmatprep.subr.mxu0 0.0
      %460 = vmatpush1.msra.mxu0 0.0
      %461 = vmatprep.subr.mxu0 0.0
      %462 = vmatpush1.msra.mxu0 0.0
      %463 = vmatprep.subr.mxu0 0.0
      %464 = vmatpush1.msra.mxu0 0.0
      %465 = vmatprep.subr.mxu0 0.0
      %466 = vmatpush1.msra.mxu0 0.0
      %467 = vmatprep.subr.mxu0 0.0
      %468 = vmatpush1.msra.mxu0 0.0
      %469 = vmatprep.subr.mxu0 0.0
      %470 = vmatpush1.msra.mxu0 0.0
      %471 = vmatprep.subr.mxu0 0.0
      %472 = vmatpush1.msra.mxu0 0.0
      %473 = vmatprep.subr.mxu0 0.0
      %474 = vmatpush1.msra.mxu0 0.0
      %475 = vmatprep.subr.mxu0 0.0
      %476 = vmatpush1.msra.mxu0 0.0
      %477 = vmatprep.subr.mxu0 0.0
      %478 = vmatpush1.msra.mxu0 0.0
      %479 = vmatprep.subr.mxu0 0.0
      %480 = vmatpush1.msra.mxu0 0.0
      %481 = vmatprep.subr.mxu0 0.0
      %482 = vmatpush1.msra.mxu0 0.0
      %483 = vmatprep.subr.mxu0 0.0
      %484 = vmatpush1.msra.mxu0 0.0
      %485 = vmatprep.subr.mxu0 0.0
      %486 = vmatpush1.msra.mxu0 0.0
      %487 = vmatprep.subr.mxu0 0.0
      %488 = vmatpush1.msra.mxu0 0.0
      %489 = vmatprep.subr.mxu0 0.0
      %490 = vmatpush1.msra.mxu0 0.0
      %491 = vmatprep.subr.mxu0 0.0
      %492 = vmatpush1.msra.mxu0 0.0
      %493 = vmatprep.subr.mxu0 0.0
      %494 = vmatpush1.msra.mxu0 0.0
      %495 = vmatprep.subr.mxu0 0.0
      %496 = vmatpush1.msra.mxu0 0.0
      %497 = vmatprep.subr.mxu0 0.0
      %498 = vmatpush1.msra.mxu0 0.0
      %499 = vmatprep.subr.mxu0 0.0
      %500 = vmatpush1.msra.mxu0 0.0
      %501 = vmatprep.subr.mxu0 0.0
      %502 = vmatpush1.msra.mxu0 0.0
      %503 = vmatprep.subr.mxu0 0.0
      %504 = vmatpush1.msra.mxu0 0.0
      %505 = vmatprep.subr.mxu0 0.0
      %506 = vmatpush1.msra.mxu0 0.0
      %507 = vmatprep.subr.mxu0 0.0
      %508 = vmatpush1.msra.mxu0 0.0
      %509 = vmatprep.subr.mxu0 0.0
      %510 = vmatpush1.msra.mxu0 0.0
      %511 = vmatprep.subr.mxu0 0.0
      %512 = vmatpush1.msra.mxu0 0.0
      %513 = vmatprep.mubr.f32.mxu0 0.0
      %514 = vmatmul.mubr.f32.gmra.mrb[0].mxu0 %v447
      %v515 = vpop.f32.mrb[0].mxu0
      %v516 = vadd.f32 %v445, %v515
      %v517 = vpop.f32.mrb[0].mxu0
      %518 = vdwg.mxu0
      %519 = vst.msk [vmem:[%s138] sm:$0xff] %vm253, %v357
      %521 = vrot.lane.b32.xlu0 %v516, 32
      %v522 = vpop.permute.xlu0 %521
      %vm524 = vcmask 351488
      %525 = vst.msk [vmem:[%s138] sm:$0xff] %vm524, %v522
      %p526 = scmp.lt.s32.totalorder %s13, 1
      %s527 = scalar_select %p526, %s13, 1
      %s528 = smul.addr %s527, 8
      %s529 = scalar_lea.vmem %s2, %s528
      // Predicated region
      $region29: #{endpoint_vector_field_forward.2} parent=27 // pred_check
        %p530 = pneg %p78
      $region30: #{endpoint_vector_field_forward.2} parent=27 // pred_check_branch
        %532 = sbr.rel (%p530) target = $region32
      $region31: #{endpoint_vector_field_forward.2} parent=27 // pred_region
        _
      $region32: #{endpoint_vector_field_forward.2} parent=27 // pred_fallthru
        _
    $region28: #{endpoint_vector_field_forward.2} parent=5 // pred_fallthru
      _
    %p533 = scmp.le.s32.totalorder 2, %s8
    // Predicated region
    $region33: #{endpoint_vector_field_forward.2} parent=5 // pred_check
      %p534 = pneg %p533
    $region34: #{endpoint_vector_field_forward.2} parent=5 // pred_check_branch
      %536 = sbr.rel (%p534) target = $region36
    $region35: #{endpoint_vector_field_forward.2} parent=5 // pred_region
      %s537 = ssub.s32 %s8, 2
      // Predicated region
      $region37: #{endpoint_vector_field_forward.2} parent=35 // pred_check
        %p538 = pneg %p84
      $region38: #{endpoint_vector_field_forward.2} parent=35 // pred_check_branch
        %540 = sbr.rel (%p538) target = $region40
      $region39: #{endpoint_vector_field_forward.2} parent=35 // pred_region
        %p541 = scmp.lt.s32.totalorder %s14, 1
        %s542 = scalar_select %p541, %s14, 1
        %s543 = smul.addr %s542, 8
        %s544 = scalar_lea.vmem %s2, %s543
      $region40: #{endpoint_vector_field_forward.2} parent=35 // pred_fallthru
        _
    $region36: #{endpoint_vector_field_forward.2} parent=5 // pred_fallthru
      _
  $region6: #{endpoint_vector_field_forward.2} parent=0 // loop_footer
    %s12 = sadd.s32 1, %s8
  $region7: #{endpoint_vector_field_forward.2} parent=0 // loop_footer_branch
    %7 = sbr.rel target = $region3
  $region8: #{endpoint_vector_field_forward.2} parent=0 // loop_exit
    _

// kernel: endpoint_vector_field_forward.3
$region0: #{endpoint_vector_field_forward.3}
  #allocation0 [shape = 'u32[]', space=smem, size = 0x4, offset = 0x4, fixed_abs, tag = 'smem constant byte address 0x4 - core index']
  #allocation1 [shape = 'u32[144,128]{1,0:T(1,128)}', space=vmem, size = 0x12000, scoped, tag = 'internal scratch']
  %s0 = inlined_call_operand.vmem [shape: f32[2,16,5], index: 0, kind: input, shape index: {}]
  %s1 = inlined_call_operand.vmem [shape: f32[16,64], index: 1, kind: input, shape index: {}]
  %s2 = inlined_call_operand.vmem [shape: f32[184,32], index: 2, kind: input, shape index: {}]
  %s3 = inlined_call_operand.vmem [shape: f32[64,64], index: 3, kind: input, shape index: {}]
  %s4 = inlined_call_operand.vmem [shape: f32[16,5], index: 4, kind: output, shape index: {}]
  %s5 = sld [smem:[#allocation0]]
  $region87: #{endpoint_vector_field_forward.3} parent=0
    _
  %s7 = ssub.s32 1, %s5
  %s8 = scalar_select 0, %s7, %s5
  $region1: #{endpoint_vector_field_forward.3} parent=0
    #allocation2 [shape = 'u8[16384]{0}', space=vmem, size = 0x4000, scoped, tag = 'input window, operand 0']
    loop: start=0, step=1, limit=4
    $region2: #{endpoint_vector_field_forward.3} parent=1 // loop_pre_header
      _
    $region3: #{endpoint_vector_field_forward.3} parent=1 // loop_header
      %s10 = sphi 0, %s14
      %p11 = scmp.ge.s32.totalorder %s10, 4
      %s20 = sphi 0, %s22
      %s23 = sphi 0, %s20
      %s24 = sphi 0, %s23
      %s40 = sphi 0, %s24
      %s46 = sphi 0, %s48
      %s49 = sphi 0, %s46
      %s50 = sphi 0, %s49
      %s66 = sphi 0, %s50
      %s70 = sphi 0, %s70
      %s72 = sphi 0, %s70
      %s73 = sphi 0, %s72
      %s87 = sphi 0, %s73
      %s91 = sphi 0, %s91
      %s93 = sphi 0, %s91
      %s94 = sphi 0, %s93
      %s108 = sphi 0, %s94
      %s114 = sphi 0, %s116
      %s117 = sphi 0, %s114
      %s118 = sphi 0, %s117
      %s134 = sphi 0, %s118
    $region4: #{endpoint_vector_field_forward.3} parent=1 // loop_header_branch
      %13 = sbr.rel (%p11) target = $region8
    $region5: #{endpoint_vector_field_forward.3} parent=1 // loop_body
      %s15 = ssub.s32 %s10, 1
      %s16 = ssub.s32 %s10, 2
      %s17 = sadd.s32 %s10, 1
      %s18 = ssub.s32 %s10, %s17
      %p19 = scmp.eq.s32.totalorder %s18, 0
      %s21 = sadd.s32 %s20, 1
      %s22 = scalar_select %p19, %s20, %s21
      %p25 = pneg %p19
      %p26 = scmp.eq.s32.totalorder %s10, 1
      %p27 = por %p25, %p26
      %p28 = scmp.ne.s32.totalorder %s20, %s23
      %p29 = scmp.eq.s32.totalorder %s10, 0
      %p30 = por %p28, %p29
      %p31 = scmp.ne.s32.totalorder %s20, %s23
      %p32 = scmp.eq.s32.totalorder %s15, 1
      %p33 = por %p31, %p32
      %p34 = scmp.ne.s32.totalorder %s23, %s24
      %p35 = scmp.eq.s32.totalorder %s15, 0
      %p36 = por %p34, %p35
      %p37 = scmp.ne.s32.totalorder %s23, %s24
      %p38 = scmp.eq.s32.totalorder %s16, 1
      %p39 = por %p37, %p38
      %p41 = scmp.ne.s32.totalorder %s24, %s40
      %p42 = scmp.eq.s32.totalorder %s16, 0
      %p43 = por %p41, %p42
      %s44 = ssub.s32 %s10, %s17
      %p45 = scmp.eq.s32.totalorder %s44, 0
      %s47 = sadd.s32 %s46, 1
      %s48 = scalar_select %p45, %s46, %s47
      %p51 = pneg %p45
      %p52 = scmp.eq.s32.totalorder %s10, 1
      %p53 = por %p51, %p52
      %p54 = scmp.ne.s32.totalorder %s46, %s49
      %p55 = scmp.eq.s32.totalorder %s10, 0
      %p56 = por %p54, %p55
      %p57 = scmp.ne.s32.totalorder %s46, %s49
      %p58 = scmp.eq.s32.totalorder %s15, 1
      %p59 = por %p57, %p58
      %p60 = scmp.ne.s32.totalorder %s49, %s50
      %p61 = scmp.eq.s32.totalorder %s15, 0
      %p62 = por %p60, %p61
      %p63 = scmp.ne.s32.totalorder %s49, %s50
      %p64 = scmp.eq.s32.totalorder %s16, 1
      %p65 = por %p63, %p64
      %p67 = scmp.ne.s32.totalorder %s50, %s66
      %p68 = scmp.eq.s32.totalorder %s16, 0
      %p69 = por %p67, %p68
      %s71 = sadd.s32 %s70, 1
      %p74 = scmp.eq.s32.totalorder %s10, 1
      %p75 = scmp.ne.s32.totalorder %s70, %s72
      %p76 = scmp.eq.s32.totalorder %s10, 0
      %p77 = por %p75, %p76
      %p78 = scmp.ne.s32.totalorder %s70, %s72
      %p79 = scmp.eq.s32.totalorder %s15, 1
      %p80 = por %p78, %p79
      %p81 = scmp.ne.s32.totalorder %s72, %s73
      %p82 = scmp.eq.s32.totalorder %s15, 0
      %p83 = por %p81, %p82
      %p84 = scmp.ne.s32.totalorder %s72, %s73
      %p85 = scmp.eq.s32.totalorder %s16, 1
      %p86 = por %p84, %p85
      %p88 = scmp.ne.s32.totalorder %s73, %s87
      %p89 = scmp.eq.s32.totalorder %s16, 0
      %p90 = por %p88, %p89
      %s92 = sadd.s32 %s91, 1
      %p95 = scmp.eq.s32.totalorder %s10, 1
      %p96 = scmp.ne.s32.totalorder %s91, %s93
      %p97 = scmp.eq.s32.totalorder %s10, 0
      %p98 = por %p96, %p97
      %p99 = scmp.ne.s32.totalorder %s91, %s93
      %p100 = scmp.eq.s32.totalorder %s15, 1
      %p101 = por %p99, %p100
      %p102 = scmp.ne.s32.totalorder %s93, %s94
      %p103 = scmp.eq.s32.totalorder %s15, 0
      %p104 = por %p102, %p103
      %p105 = scmp.ne.s32.totalorder %s93, %s94
      %p106 = scmp.eq.s32.totalorder %s16, 1
      %p107 = por %p105, %p106
      %p109 = scmp.ne.s32.totalorder %s94, %s108
      %p110 = scmp.eq.s32.totalorder %s16, 0
      %p111 = por %p109, %p110
      %s112 = ssub.s32 %s10, %s17
      %p113 = scmp.eq.s32.totalorder %s112, 0
      %s115 = sadd.s32 %s114, 1
      %s116 = scalar_select %p113, %s114, %s115
      %p119 = pneg %p113
      %p120 = scmp.eq.s32.totalorder %s10, 1
      %p121 = por %p119, %p120
      %p122 = scmp.ne.s32.totalorder %s114, %s117
      %p123 = scmp.eq.s32.totalorder %s10, 0
      %p124 = por %p122, %p123
      %p125 = scmp.ne.s32.totalorder %s114, %s117
      %p126 = scmp.eq.s32.totalorder %s15, 1
      %p127 = por %p125, %p126
      %p128 = scmp.ne.s32.totalorder %s117, %s118
      %p129 = scmp.eq.s32.totalorder %s15, 0
      %p130 = por %p128, %p129
      %p131 = scmp.ne.s32.totalorder %s117, %s118
      %p132 = scmp.eq.s32.totalorder %s16, 1
      %p133 = por %p131, %p132
      %p135 = scmp.ne.s32.totalorder %s118, %s134
      %p136 = scmp.eq.s32.totalorder %s16, 0
      %p137 = por %p135, %p136
      %p138 = scmp.le.s32.totalorder 1, %s10
      %p139 = scmp.lt.s32.totalorder %s10, 3
      %p140 = pnand %p138, %p139
      %p141 = pneg %p140
      // Predicated region
      $region9: #{endpoint_vector_field_forward.3} parent=5 // pred_check
        _
      $region10: #{endpoint_vector_field_forward.3} parent=5 // pred_check_branch
        %143 = sbr.rel (%p140) target = $region12
      $region11: #{endpoint_vector_field_forward.3} parent=5 // pred_region
        %s144 = ssub.s32 %s10, 1
        // Predicated region
        $region13: #{endpoint_vector_field_forward.3} parent=11 // pred_check
          %p145 = pneg %p83
        $region14: #{endpoint_vector_field_forward.3} parent=11 // pred_check_branch
          %147 = sbr.rel (%p145) target = $region16
        $region15: #{endpoint_vector_field_forward.3} parent=11 // pred_region
          _
        $region16: #{endpoint_vector_field_forward.3} parent=11 // pred_fallthru
          _
        // Predicated region
        $region17: #{endpoint_vector_field_forward.3} parent=11 // pred_check
          %p148 = pneg %p104
        $region18: #{endpoint_vector_field_forward.3} parent=11 // pred_check_branch
          %150 = sbr.rel (%p148) target = $region20
        $region19: #{endpoint_vector_field_forward.3} parent=11 // pred_region
          _
        $region20: #{endpoint_vector_field_forward.3} parent=11 // pred_fallthru
          _
      $region12: #{endpoint_vector_field_forward.3} parent=5 // pred_fallthru
        _
      %p151 = scmp.lt.s32.totalorder %s10, 2
      // Predicated region
      $region21: #{endpoint_vector_field_forward.3} parent=5 // pred_check
        %p152 = pneg %p151
      $region22: #{endpoint_vector_field_forward.3} parent=5 // pred_check_branch
        %154 = sbr.rel (%p152) target = $region24
      $region23: #{endpoint_vector_field_forward.3} parent=5 // pred_region
        // Predicated region
        $region25: #{endpoint_vector_field_forward.3} parent=23 // pred_check
          %p155 = pneg %p30
        $region26: #{endpoint_vector_field_forward.3} parent=23 // pred_check_branch
          %157 = sbr.rel (%p155) target = $region28
        $region27: #{endpoint_vector_field_forward.3} parent=23 // pred_region
          %s158 = sand.u32 %s20, 1
          %s159 = sand.u32 %s20, 1
          %s160 = smul.addr %s159, 16
          %s161 = scalar_lea.vmem [#allocation2], %s160
          %s162 = smul.addr %s10, 8
          %s163 = scalar_lea.vmem %s0, %s162
          // Predicated region
          $region29: #{endpoint_vector_field_forward.3} parent=27 // pred_check
            _
          $region30: #{endpoint_vector_field_forward.3} parent=27 // pred_check_branch
            %165 = sbr.rel (0) target = $region32
          $region31: #{endpoint_vector_field_forward.3} parent=27 // pred_region
            // Predicated region
            $region33: #{endpoint_vector_field_forward.3} parent=31 // pred_check
              _
            $region34: #{endpoint_vector_field_forward.3} parent=31 // pred_check_branch
              %167 = sbr.rel (0) target = $region36
            $region35: #{endpoint_vector_field_forward.3} parent=31 // pred_region
              // Predicated region
              $region48: #{endpoint_vector_field_forward.3} parent=35 // pred_check
                _
              $region49: #{endpoint_vector_field_forward.3} parent=35 // pred_check_branch
                %184 = sbr.rel (0) target = $region51
              $region50: #{endpoint_vector_field_forward.3} parent=35 // pred_region
                loop: start=0, step=1, limit=1
                $region52: #{endpoint_vector_field_forward.3} parent=50 // loop_pre_header
                  _
                $region53: #{endpoint_vector_field_forward.3} parent=50 // loop_header
                  %s186 = sphi 0, %s190
                  %p187 = scmp.ge.s32.totalorder %s186, 1
                  %s191 = sphi %s163, %s163
                  %s192 = sphi %s161, %s161
                $region54: #{endpoint_vector_field_forward.3} parent=50 // loop_header_branch
                  %189 = sbr.rel (%p187) target = $region58
                $region55: #{endpoint_vector_field_forward.3} parent=50 // loop_body
                  %v193 = vld [vmem:[%s191] sm:$0xff]
                  %194 = vst [vmem:[%s192] sm:$0xff] %v193
                  %v195 = vld [vmem:[%s191 + $0x10] sm:$0xff]
                  %196 = vst [vmem:[%s192 + $0x8] sm:$0xff] %v195
                $region56: #{endpoint_vector_field_forward.3} parent=50 // loop_footer
                  %s190 = sadd.s32 1, %s186
                $region57: #{endpoint_vector_field_forward.3} parent=50 // loop_footer_branch
                  %185 = sbr.rel target = $region53
                $region58: #{endpoint_vector_field_forward.3} parent=50 // loop_exit
                  _
              $region51: #{endpoint_vector_field_forward.3} parent=35 // pred_fallthru
                _
              // Predicated region
              $region59: #{endpoint_vector_field_forward.3} parent=35 // pred_check
                _
              $region60: #{endpoint_vector_field_forward.3} parent=35 // pred_check_branch
                %198 = sbr.rel target = $region62
              $region61: #{endpoint_vector_field_forward.3} parent=35 // pred_region
                _
              $region62: #{endpoint_vector_field_forward.3} parent=35 // pred_fallthru
                _
            $region36: #{endpoint_vector_field_forward.3} parent=31 // pred_fallthru
              _
            // Predicated region
            $region37: #{endpoint_vector_field_forward.3} parent=31 // pred_check
              _
            $region38: #{endpoint_vector_field_forward.3} parent=31 // pred_check_branch
              %169 = sbr.rel target = $region40
            $region39: #{endpoint_vector_field_forward.3} parent=31 // pred_region
              loop: start=0, step=1, limit=1
              $region41: #{endpoint_vector_field_forward.3} parent=39 // loop_pre_header
                _
              $region42: #{endpoint_vector_field_forward.3} parent=39 // loop_header
                %s172 = sphi 0, %s176
                %p173 = scmp.ge.s32.totalorder %s172, 1
                %s177 = sphi %s163, %s163
                %s178 = sphi %s161, %s161
              $region43: #{endpoint_vector_field_forward.3} parent=39 // loop_header_branch
                %175 = sbr.rel (%p173) target = $region47
              $region44: #{endpoint_vector_field_forward.3} parent=39 // loop_body
                %v179 = vld [vmem:[%s177] sm:$0xff]
                %180 = vst [vmem:[%s178] sm:$0xff] %v179
                %v181 = vld [vmem:[%s177 + $0x10] sm:$0xff]
                %182 = vst [vmem:[%s178 + $0x8] sm:$0xff] %v181
              $region45: #{endpoint_vector_field_forward.3} parent=39 // loop_footer
                %s176 = sadd.s32 1, %s172
              $region46: #{endpoint_vector_field_forward.3} parent=39 // loop_footer_branch
                %171 = sbr.rel target = $region42
              $region47: #{endpoint_vector_field_forward.3} parent=39 // loop_exit
                _
            $region40: #{endpoint_vector_field_forward.3} parent=31 // pred_fallthru
              _
          $region32: #{endpoint_vector_field_forward.3} parent=27 // pred_fallthru
            _
          %199 = vnop
        $region28: #{endpoint_vector_field_forward.3} parent=23 // pred_fallthru
          _
        // Predicated region
        $region63: #{endpoint_vector_field_forward.3} parent=23 // pred_check
          %p200 = pneg %p56
        $region64: #{endpoint_vector_field_forward.3} parent=23 // pred_check_branch
          %202 = sbr.rel (%p200) target = $region66
        $region65: #{endpoint_vector_field_forward.3} parent=23 // pred_region
          %p203 = scmp.lt.s32.totalorder %s10, 1
          %s204 = scalar_select %p203, %s10, 1
          %s205 = smul.addr %s204, 8
          %s206 = scalar_lea.vmem %s1, %s205
        $region66: #{endpoint_vector_field_forward.3} parent=23 // pred_fallthru
          _
      $region24: #{endpoint_vector_field_forward.3} parent=5 // pred_fallthru
        _
      %p207 = scmp.le.s32.totalorder 1, %s10
      %p208 = scmp.lt.s32.totalorder %s10, 3
      %p209 = pnand %p207, %p208
      %p210 = pneg %p209
      // Predicated region
      $region67: #{endpoint_vector_field_forward.3} parent=5 // pred_check
        _
      $region68: #{endpoint_vector_field_forward.3} parent=5 // pred_check_branch
        %212 = sbr.rel (%p209) target = $region70
      $region69: #{endpoint_vector_field_forward.3} parent=5 // pred_region
        %s213 = ssub.s32 %s10, 1
        %s214 = sand.u32 %s23, 1
        %s215 = sand.u32 %s23, 1
        %s216 = smul.addr %s215, 16
        %s217 = scalar_lea.vmem [#allocation2], %s216
        // Predicated region
        $region71: #{endpoint_vector_field_forward.3} parent=69 // pred_check
          %p218 = pneg %p36
        $region72: #{endpoint_vector_field_forward.3} parent=69 // pred_check_branch
          %220 = sbr.rel (%p218) target = $region74
        $region73: #{endpoint_vector_field_forward.3} parent=69 // pred_region
          _
        $region74: #{endpoint_vector_field_forward.3} parent=69 // pred_fallthru
          _
        %s221 = sand.u32 %s23, 1
        %s222 = sand.u32 %s23, 1
        %s223 = smul.addr %s222, 16
        %s224 = scalar_lea.vmem [#allocation2], %s223
        %p225 = pneg %p36
        %p226 = pneg %p33
        %p227 = scmp.lt.s32.totalorder %s15, 1
        %s228 = scalar_select %p227, %s15, 1
        %s229 = smul.addr %s228, 8
        %s230 = scalar_lea.vmem %s1, %s229
        %p231 = pneg %p62
        %p232 = pneg %p59
        %p233 = pneg %p83
        %p234 = pneg %p80
        %p235 = pneg %p104
        %p236 = pneg %p101
        %p237 = pneg %p130
        %p238 = pneg %p127
        %p239 = scmp.lt.s32.totalorder %s15, 1
        %s240 = scalar_select %p239, %s15, 1
        %s241 = smul.addr %s240, 8
        %s242 = scalar_lea.vmem %s4, %s241
        %p243 = scmp.lt.s32.totalorder %s15, 1
        %s244 = scalar_select %p243, %s15, 1
        %s245 = smul.addr %s244, 8
        %s246 = scalar_lea.vmem %s1, %s245
        %p247 = scmp.lt.s32.totalorder %s15, 1
        %s248 = scalar_select %p247, %s15, 1
        %s249 = smul.addr %s248, 8
        %s250 = scalar_lea.vmem %s4, %s249
        %v251 = vld [vmem:[%s2] sm:$0x1f]
        %v252 = vld [vmem:[%s2 + $0x8] sm:$0xff]
        %v253 = vld [vmem:[%s2 + $0x10] sm:$0xff]
        %v254 = vld [vmem:[%s2 + $0x18] sm:$0xff]
        %v255 = vld [vmem:[%s2 + $0x20] sm:$0xff]
        %v256 = vld [vmem:[%s2 + $0x28] sm:$0xff]
        %v257 = vld [vmem:[%s2 + $0x30] sm:$0xff]
        %v258 = vld [vmem:[%s2 + $0x38] sm:$0xff]
        %v259 = vld [vmem:[%s2 + $0x40] sm:$0xff]
        %v260 = vld [vmem:[%s2 + $0x48] sm:$0xff]
        %v261 = vld [vmem:[%s2 + $0x50] sm:$0xff]
        %v262 = vld [vmem:[%s2 + $0x58] sm:$0xff]
        %v263 = vld [vmem:[%s2 + $0x60] sm:$0xff]
        %v264 = vld [vmem:[%s2 + $0x68] sm:$0xff]
        %v265 = vld [vmem:[%s2 + $0x70] sm:$0xff]
        %v266 = vld [vmem:[%s2 + $0x78] sm:$0xff]
        %v267 = vld [vmem:[%s2 + $0x80] sm:$0xff]
        %v268 = vld [vmem:[%s2 + $0x88] sm:$0xff]
        %v269 = vld [vmem:[%s2 + $0x90] sm:$0xff]
        %v270 = vld [vmem:[%s2 + $0x98] sm:$0xff]
        %v271 = vld [vmem:[%s2 + $0xa0] sm:$0xff]
        %v272 = vld [vmem:[%s2 + $0xa8] sm:$0x1]
        %v273 = vld [vmem:[%s2 + $0xa9] sm:$0x1]
        %v274 = vld [vmem:[%s2 + $0xaa] sm:$0x1]
        %v275 = vld [vmem:[%s2 + $0xab] sm:$0x1]
        %v276 = vld [vmem:[%s2 + $0xac] sm:$0x1]
        %v277 = vld [vmem:[%s2 + $0xad] sm:$0x1]
        %v278 = vld [vmem:[%s2 + $0xae] sm:$0x1]
        %v279 = vld [vmem:[%s2 + $0xaf] sm:$0x1]
        %v280 = vld [vmem:[%s2 + $0xb0] sm:$0x1]
        %v281 = vld [vmem:[%s2 + $0xb1] sm:$0x1]
        %v282 = vld [vmem:[%s3] sm:$0xff]
        %v283 = vld [vmem:[%s3 + $0x8] sm:$0xff]
        %v284 = vld [vmem:[%s3 + $0x10] sm:$0xff]
        %v285 = vld [vmem:[%s3 + $0x18] sm:$0xff]
        %v286 = vld [vmem:[%s3 + $0x20] sm:$0xff]
        %v287 = vld [vmem:[%s3 + $0x28] sm:$0xff]
        %v288 = vld [vmem:[%s3 + $0x30] sm:$0xff]
        %v289 = vld [vmem:[%s3 + $0x38] sm:$0xff]
        %v290 = vld [vmem:[%s217] sm:$0xff]
        %s291 = scalar_lea.vmem %s217, 8 [#allocation2]
        %v292 = vld [vmem:[%s291] sm:$0xff]
        %v293 = vlaneseq
        %v294 = vshrl.u32 %v293, 7
        %v295 = vsub.s32 0, %v294
        %v296 = vrot.slane %v272, %v295
        %vm297 = vcmask 39936
        %v299 = vsel %vm297, %v290, 0
        %v302 = vsel %vm297, %v292, 0
        %vm304 = vcmask 1044480
        %v306 = vsel %vm304, %v251, 0
        %308 = vmatprep.subr.mxu0 0.0
        %309 = vmatpush1.msra.mxu0 %v306
        %310 = vmatprep.subr.mxu0 0.0
        %311 = vmatpush1.msra.mxu0 0.0
        %312 = vmatprep.subr.mxu0 0.0
        %313 = vmatpush1.msra.mxu0 0.0
        %314 = vmatprep.subr.mxu0 0.0
        %315 = vmatpush1.msra.mxu0 0.0
        %316 = vmatprep.subr.mxu0 0.0
        %317 = vmatpush1.msra.mxu0 0.0
        %318 = vmatprep.subr.mxu0 0.0
        %319 = vmatpush1.msra.mxu0 0.0
        %320 = vmatprep.subr.mxu0 0.0
        %321 = vmatpush1.msra.mxu0 0.0
        %322 = vmatprep.subr.mxu0 0.0
        %323 = vmatpush1.msra.mxu0 0.0
        %324 = vmatprep.subr.mxu0 0.0
        %325 = vmatpush1.msra.mxu0 0.0
        %326 = vmatprep.subr.mxu0 0.0
        %327 = vmatpush1.msra.mxu0 0.0
        %328 = vmatprep.subr.mxu0 0.0
        %329 = vmatpush1.msra.mxu0 0.0
        %330 = vmatprep.subr.mxu0 0.0
        %331 = vmatpush1.msra.mxu0 0.0
        %332 = vmatprep.subr.mxu0 0.0
        %333 = vmatpush1.msra.mxu0 0.0
        %334 = vmatprep.subr.mxu0 0.0
        %335 = vmatpush1.msra.mxu0 0.0
        %336 = vmatprep.subr.mxu0 0.0
        %337 = vmatpush1.msra.mxu0 0.0
        %338 = vmatprep.subr.mxu0 0.0
        %339 = vmatpush1.msra.mxu0 0.0
        %340 = vmatprep.subr.mxu0 0.0
        %341 = vmatpush1.msra.mxu0 0.0
        %342 = vmatprep.subr.mxu0 0.0
        %343 = vmatpush1.msra.mxu0 0.0
        %344 = vmatprep.subr.mxu0 0.0
        %345 = vmatpush1.msra.mxu0 0.0
        %346 = vmatprep.subr.mxu0 0.0
        %347 = vmatpush1.msra.mxu0 0.0
        %348 = vmatprep.subr.mxu0 0.0
        %349 = vmatpush1.msra.mxu0 0.0
        %350 = vmatprep.subr.mxu0 0.0
        %351 = vmatpush1.msra.mxu0 0.0
        %352 = vmatprep.subr.mxu0 0.0
        %353 = vmatpush1.msra.mxu0 0.0
        %354 = vmatprep.subr.mxu0 0.0
        %355 = vmatpush1.msra.mxu0 0.0
        %356 = vmatprep.subr.mxu0 0.0
        %357 = vmatpush1.msra.mxu0 0.0
        %358 = vmatprep.subr.mxu0 0.0
        %359 = vmatpush1.msra.mxu0 0.0
        %360 = vmatprep.subr.mxu0 0.0
        %361 = vmatpush1.msra.mxu0 0.0
        %362 = vmatprep.subr.mxu0 0.0
        %363 = vmatpush1.msra.mxu0 0.0
        %364 = vmatprep.subr.mxu0 0.0
        %365 = vmatpush1.msra.mxu0 0.0
        %366 = vmatprep.subr.mxu0 0.0
        %367 = vmatpush1.msra.mxu0 0.0
        %368 = vmatprep.subr.mxu0 0.0
        %369 = vmatpush1.msra.mxu0 0.0
        %370 = vmatprep.subr.mxu0 0.0
        %371 = vmatpush1.msra.mxu0 0.0
        %372 = vmatprep.mubr.f32.mxu0 0.0
        %373 = vmatmul.mubr.f32.gmra.mrb[0].mxu0 %v299
        %v374 = vpop.f32.mrb[0].mxu0
        %v375 = vadd.f32 %v296, %v374
        %v376 = vpop.f32.mrb[0].mxu0
        %377 = vmatprep.mubr.f32.mxu0 0.0
        %378 = vmatmul.mubr.f32.gmra.mrb[0].mxu0 %v302
        %v379 = vpop.f32.mrb[0].mxu0
        %v380 = vadd.f32 %v296, %v379
        %v381 = vpop.f32.mrb[0].mxu0
        %382 = vdwg.mxu0
        %v383 = vxor.u32 %v375, 2147483648
        %v384 = vxor.u32 %v380, 2147483648
        %v385 = vmul.f32 %v383, 1.442695
        %v386 = vpow.pop %v385
        %v387 = vmul.f32 %v384, 1.442695
        %v388 = vpow.pop %v387
        %v389 = vadd.f32 %v386, 1.0
        %v390 = vadd.f32 %v388, 1.0
        %v391 = vrcp.pop %v389
        %v392 = vmul.f32 1.0, %v391
        %v393 = vrcp.pop %v390
        %v394 = vmul.f32 1.0, %v393
        %v395 = vmul.f32 %v375, %v392
        %v396 = vmul.f32 %v380, %v394
        %v397 = vlaneseq
        %v398 = vshrl.u32 %v397, 7
        %v399 = vsub.s32 0, %v398
        %v400 = vrot.slane %v273, %v399
        %vm401 = vcmask 261120
        %v403 = vsel %vm401, %v395, 0
        %v406 = vsel %vm401, %v396, 0
        %408 = vmatprep.subr.mxu0 0.0
        %409 = vmatpush1.msra.mxu0 %v252
        %410 = vmatprep.subr.mxu0 0.0
        %411 = vmatpush1.msra.mxu0 %v253
        %412 = vmatprep.subr.mxu0 0.0
        %413 = vmatpush1.msra.mxu0 %v254
        %414 = vmatprep.subr.mxu0 0.0
        %415 = vmatpush1.msra.mxu0 %v255
        %416 = vmatprep.subr.mxu0 0.0
        %417 = vmatpush1.msra.mxu0 0.0
        %418 = vmatprep.subr.mxu0 0.0
        %419 = vmatpush1.msra.mxu0 0.0
        %420 = vmatprep.subr.mxu0 0.0
        %421 = vmatpush1.msra.mxu0 0.0
        %422 = vmatprep.subr.mxu0 0.0
        %423 = vmatpush1.msra.mxu0 0.0
        %424 = vmatprep.subr.mxu0 0.0
        %425 = vmatpush1.msra.mxu0 0.0
        %426 = vmatprep.subr.mxu0 0.0
        %427 = vmatpush1.msra.mxu0 0.0
        %428 = vmatprep.subr.mxu0 0.0
        %429 = vmatpush1.msra.mxu0 0.0
        %430 = vmatprep.subr.mxu0 0.0
        %431 = vmatpush1.msra.mxu0 0.0
        %432 = vmatprep.subr.mxu0 0.0
        %433 = vmatpush1.msra.mxu0 0.0
        %434 = vmatprep.subr.mxu0 0.0
        %435 = vmatpush1.msra.mxu0 0.0
        %436 = vmatprep.subr.mxu0 0.0
        %437 = vmatpush1.msra.mxu0 0.0
        %438 = vmatprep.subr.mxu0 0.0
        %439 = vmatpush1.msra.mxu0 0.0
        %440 = vmatprep.subr.mxu0 0.0
        %441 = vmatpush1.msra.mxu0 0.0
        %442 = vmatprep.subr.mxu0 0.0
        %443 = vmatpush1.msra.mxu0 0.0
        %444 = vmatprep.subr.mxu0 0.0
        %445 = vmatpush1.msra.mxu0 0.0
        %446 = vmatprep.subr.mxu0 0.0
        %447 = vmatpush1.msra.mxu0 0.0
        %448 = vmatprep.subr.mxu0 0.0
        %449 = vmatpush1.msra.mxu0 0.0
        %450 = vmatprep.subr.mxu0 0.0
        %451 = vmatpush1.msra.mxu0 0.0
        %452 = vmatprep.subr.mxu0 0.0
        %453 = vmatpush1.msra.mxu0 0.0
        %454 = vmatprep.subr.mxu0 0.0
        %455 = vmatpush1.msra.mxu0 0.0
        %456 = vmatprep.subr.mxu0 0.0
        %457 = vmatpush1.msra.mxu0 0.0
        %458 = vmatprep.subr.mxu0 0.0
        %459 = vmatpush1.msra.mxu0 0.0
        %460 = vmatprep.subr.mxu0 0.0
        %461 = vmatpush1.msra.mxu0 0.0
        %462 = vmatprep.subr.mxu0 0.0
        %463 = vmatpush1.msra.mxu0 0.0
        %464 = vmatprep.subr.mxu0 0.0
        %465 = vmatpush1.msra.mxu0 0.0
        %466 = vmatprep.subr.mxu0 0.0
        %467 = vmatpush1.msra.mxu0 0.0
        %468 = vmatprep.subr.mxu0 0.0
        %469 = vmatpush1.msra.mxu0 0.0
        %470 = vmatprep.subr.mxu0 0.0
        %471 = vmatpush1.msra.mxu0 0.0
        %472 = vmatprep.mubr.f32.mxu0 0.0
        %473 = vmatmul.mubr.f32.gmra.mrb[0].mxu0 %v403
        %v474 = vpop.f32.mrb[0].mxu0
        %v475 = vadd.f32 %v400, %v474
        %v476 = vpop.f32.mrb[0].mxu0
        %477 = vmatprep.mubr.f32.mxu0 0.0
        %478 = vmatmul.mubr.f32.gmra.mrb[0].mxu0 %v406
        %v479 = vpop.f32.mrb[0].mxu0
        %v480 = vadd.f32 %v400, %v479
        %v481 = vpop.f32.mrb[0].mxu0
        %482 = vdwg.mxu0
        %v483 = vxor.u32 %v475, 2147483648
        %v484 = vxor.u32 %v480, 2147483648
        %v485 = vmul.f32 %v483, 1.442695
        %v486 = vpow.pop %v485
        %v487 = vmul.f32 %v484, 1.442695
        %v488 = vpow.pop %v487
        %v489 = vadd.f32 %v486, 1.0
        %v490 = vadd.f32 %v488, 1.0
        %v491 = vrcp.pop %v489
        %v492 = vmul.f32 1.0, %v491
        %v493 = vrcp.pop %v490
        %v494 = vmul.f32 1.0, %v493
        %v495 = vmul.f32 %v475, %v492
        %v496 = vmul.f32 %v480, %v494
        %v497 = vsel %vm401, %v495, 0.0
        %498 = vadd.xlane.f32.xlu0 %v497
        %v499 = vpop.xlane.xlu0 %498
        %v500 = vsel %vm401, %v496, 0.0
        %501 = vadd.xlane.f32.xlu0 %v500
        %v502 = vpop.xlane.xlu0 %501
        %v503 = vrcp.pop 32.0
        %v504 = vmul.f32 %v499, %v503
        %v505 = vmul.f32 %v502, %v503
        %v506 = vsub.f32 %v495, %v504
        %v507 = vsub.f32 %v496, %v505
        %v508 = vmul.f32 %v506, %v506
        %v509 = vmul.f32 %v507, %v507
        %v510 = vsel %vm401, %v508, 0.0
        %511 = vadd.xlane.f32.xlu0 %v510
        %v512 = vpop.xlane.xlu0 %511
        %v513 = vsel %vm401, %v509, 0.0
        %514 = vadd.xlane.f32.xlu0 %v513
        %v515 = vpop.xlane.xlu0 %514
        %v516 = vmul.f32 %v512, %v503
        %v517 = vmul.f32 %v515, %v503
        %v518 = vadd.f32 %v516, 1e-05
        %v519 = vadd.f32 %v517, 1e-05
        %v520 = vrsqrt.pop %v518
        %v521 = vrsqrt.pop %v519
        %v522 = vmul.f32 %v506, %v520
        %v523 = vmul.f32 %v507, %v521
        %v524 = vlaneseq
        %v525 = vshrl.u32 %v524, 7
        %v526 = vsub.s32 0, %v525
        %v527 = vrot.slane %v274, %v526
        %v528 = vmul.f32 %v522, %v527
        %v529 = vmul.f32 %v523, %v527
        %v530 = vlaneseq
        %v531 = vshrl.u32 %v530, 7
        %v532 = vsub.s32 0, %v531
        %v533 = vrot.slane %v275, %v532
        %v534 = vadd.f32 %v528, %v533
        %v535 = vadd.f32 %v529, %v533
        %v536 = vld [vmem:[%s246] sm:$0xff]
        %vm537 = vcmask 523264
        %v539 = vsel %vm537, %v536, 0
        %541 = vmatprep.subr.mxu0 0.0
        %542 = vmatpush1.msra.mxu0 %v282
        %543 = vmatprep.subr.mxu0 0.0
        %544 = vmatpush1.msra.mxu0 %v283
        %545 = vmatprep.subr.mxu0 0.0
        %546 = vmatpush1.msra.mxu0 %v284
        %547 = vmatprep.subr.mxu0 0.0
        %548 = vmatpush1.msra.mxu0 %v285
        %549 = vmatprep.subr.mxu0 0.0
        %550 = vmatpush1.msra.mxu0 %v286
        %551 = vmatprep.subr.mxu0 0.0
        %552 = vmatpush1.msra.mxu0 %v287
        %553 = vmatprep.subr.mxu0 0.0
        %554 = vmatpush1.msra.mxu0 %v288
        %555 = vmatprep.subr.mxu0 0.0
        %556 = vmatpush1.msra.mxu0 %v289
        %557 = vmatprep.subr.mxu0 0.0
        %558 = vmatpush1.msra.mxu0 0.0
        %559 = vmatprep.subr.mxu0 0.0
        %560 = vmatpush1.msra.mxu0 0.0
        %561 = vmatprep.subr.mxu0 0.0
        %562 = vmatpush1.msra.mxu0 0.0
        %563 = vmatprep.subr.mxu0 0.0
        %564 = vmatpush1.msra.mxu0 0.0
        %565 = vmatprep.subr.mxu0 0.0
        %566 = vmatpush1.msra.mxu0 0.0
        %567 = vmatprep.subr.mxu0 0.0
        %568 = vmatpush1.msra.mxu0 0.0
        %569 = vmatprep.subr.mxu0 0.0
        %570 = vmatpush1.msra.mxu0 0.0
        %571 = vmatprep.subr.mxu0 0.0
        %572 = vmatpush1.msra.mxu0 0.0
        %573 = vmatprep.subr.mxu0 0.0
        %574 = vmatpush1.msra.mxu0 0.0
        %575 = vmatprep.subr.mxu0 0.0
        %576 = vmatpush1.msra.mxu0 0.0
        %577 = vmatprep.subr.mxu0 0.0
        %578 = vmatpush1.msra.mxu0 0.0
        %579 = vmatprep.subr.mxu0 0.0
        %580 = vmatpush1.msra.mxu0 0.0
        %581 = vmatprep.subr.mxu0 0.0
        %582 = vmatpush1.msra.mxu0 0.0
        %583 = vmatprep.subr.mxu0 0.0
        %584 = vmatpush1.msra.mxu0 0.0
        %585 = vmatprep.subr.mxu0 0.0
        %586 = vmatpush1.msra.mxu0 0.0
        %587 = vmatprep.subr.mxu0 0.0
        %588 = vmatpush1.msra.mxu0 0.0
        %589 = vmatprep.subr.mxu0 0.0
        %590 = vmatpush1.msra.mxu0 0.0
        %591 = vmatprep.subr.mxu0 0.0
        %592 = vmatpush1.msra.mxu0 0.0
        %593 = vmatprep.subr.mxu0 0.0
        %594 = vmatpush1.msra.mxu0 0.0
        %595 = vmatprep.subr.mxu0 0.0
        %596 = vmatpush1.msra.mxu0 0.0
        %597 = vmatprep.subr.mxu0 0.0
        %598 = vmatpush1.msra.mxu0 0.0
        %599 = vmatprep.subr.mxu0 0.0
        %600 = vmatpush1.msra.mxu0 0.0
        %601 = vmatprep.subr.mxu0 0.0
        %602 = vmatpush1.msra.mxu0 0.0
        %603 = vmatprep.subr.mxu0 0.0
        %604 = vmatpush1.msra.mxu0 0.0
        %605 = vmatprep.mubr.f32.mxu0 0.0
        %606 = vmatmul.mubr.f32.gmra.mrb[0].mxu0 %v539
        %v607 = vpop.f32.mrb[0].mxu0
        %v608 = vadd.f32 0.0, %v607
        %v609 = vpop.f32.mrb[0].mxu0
        %610 = vdwg.mxu0
        %612 = vrot.lane.b32.xlu0 %v608, 96
        %v613 = vpop.permute.xlu0 %612
        %v615 = vlaneseq
        %v616 = vshrl.u32 %v615, 7
        %v617 = vsub.s32 0, %v616
        %v618 = vrot.slane %v276, %v617
        %v619 = vadd.f32 %v608, %v618
        %v620 = vadd.f32 %v613, %v618
        %v622 = vsel %vm401, %v534, 0
        %v625 = vsel %vm401, %v535, 0
        %627 = vmatprep.subr.mxu0 0.0
        %628 = vmatpush1.msra.mxu0 %v256
        %629 = vmatprep.subr.mxu0 0.0
        %630 = vmatpush1.msra.mxu0 %v257
        %631 = vmatprep.subr.mxu0 0.0
        %632 = vmatpush1.msra.mxu0 %v258
        %633 = vmatprep.subr.mxu0 0.0
        %634 = vmatpush1.msra.mxu0 %v259
        %635 = vmatprep.subr.mxu0 0.0
        %636 = vmatpush1.msra.mxu0 0.0
        %637 = vmatprep.subr.mxu0 0.0
        %638 = vmatpush1.msra.mxu0 0.0
        %639 = vmatprep.subr.mxu0 0.0
        %640 = vmatpush1.msra.mxu0 0.0
        %641 = vmatprep.subr.mxu0 0.0
        %642 = vmatpush1.msra.mxu0 0.0
        %643 = vmatprep.subr.mxu0 0.0
        %644 = vmatpush1.msra.mxu0 0.0
        %645 = vmatprep.subr.mxu0 0.0
        %646 = vmatpush1.msra.mxu0 0.0
        %647 = vmatprep.subr.mxu0 0.0
        %648 = vmatpush1.msra.mxu0 0.0
        %649 = vmatprep.subr.mxu0 0.0
        %650 = vmatpush1.msra.mxu0 0.0
        %651 = vmatprep.subr.mxu0 0.0
        %652 = vmatpush1.msra.mxu0 0.0
        %653 = vmatprep.subr.mxu0 0.0
        %654 = vmatpush1.msra.mxu0 0.0
        %655 = vmatprep.subr.mxu0 0.0
        %656 = vmatpush1.msra.mxu0 0.0
        %657 = vmatprep.subr.mxu0 0.0
        %658 = vmatpush1.msra.mxu0 0.0
        %659 = vmatprep.subr.mxu0 0.0
        %660 = vmatpush1.msra.mxu0 0.0
        %661 = vmatprep.subr.mxu0 0.0
        %662 = vmatpush1.msra.mxu0 0.0
        %663 = vmatprep.subr.mxu0 0.0
        %664 = vmatpush1.msra.mxu0 0.0
        %665 = vmatprep.subr.mxu0 0.0
        %666 = vmatpush1.msra.mxu0 0.0
        %667 = vmatprep.subr.mxu0 0.0
        %668 = vmatpush1.msra.mxu0 0.0
        %669 = vmatprep.subr.mxu0 0.0
        %670 = vmatpush1.msra.mxu0 0.0
        %671 = vmatprep.subr.mxu0 0.0
        %672 = vmatpush1.msra.mxu0 0.0
        %673 = vmatprep.subr.mxu0 0.0
        %674 = vmatpush1.msra.mxu0 0.0
        %675 = vmatprep.subr.mxu0 0.0
        %676 = vmatpush1.msra.mxu0 0.0
        %677 = vmatprep.subr.mxu0 0.0
        %678 = vmatpush1.msra.mxu0 0.0
        %679 = vmatprep.subr.mxu0 0.0
        %680 = vmatpush1.msra.mxu0 0.0
        %681 = vmatprep.subr.mxu0 0.0
        %682 = vmatpush1.msra.mxu0 0.0
        %683 = vmatprep.subr.mxu0 0.0
        %684 = vmatpush1.msra.mxu0 0.0
        %685 = vmatprep.subr.mxu0 0.0
        %686 = vmatpush1.msra.mxu0 0.0
        %687 = vmatprep.subr.mxu0 0.0
        %688 = vmatpush1.msra.mxu0 0.0
        %689 = vmatprep.subr.mxu0 0.0
        %690 = vmatpush1.msra.mxu0 0.0
        %691 = vmatprep.mubr.f32.mxu0 0.0
        %692 = vmatmul.mubr.f32.gmra.mrb[0].mxu0 %v622
        %v693 = vpop.f32.mrb[0].mxu0
        %v694 = vadd.f32 0.0, %v693
        %v695 = vpop.f32.mrb[0].mxu0
        %696 = vmatprep.mubr.f32.mxu0 0.0
        %697 = vmatmul.mubr.f32.gmra.mrb[0].mxu0 %v625
        %v698 = vpop.f32.mrb[0].mxu0
        %v699 = vadd.f32 0.0, %v698
        %v700 = vpop.f32.mrb[0].mxu0
        %701 = vdwg.mxu0
        %v702 = vadd.f32 %v619, %v694
        %v703 = vadd.f32 %v620, %v699
        %v704 = vxor.u32 %v702, 2147483648
        %v705 = vxor.u32 %v703, 2147483648
        %v706 = vmul.f32 %v704, 1.442695
        %v707 = vpow.pop %v706
        %v708 = vmul.f32 %v705, 1.442695
        %v709 = vpow.pop %v708
        %v710 = vadd.f32 %v707, 1.0
        %v711 = vadd.f32 %v709, 1.0
        %v712 = vrcp.pop %v710
        %v713 = vmul.f32 1.0, %v712
        %v714 = vrcp.pop %v711
        %v715 = vmul.f32 1.0, %v714
        %v716 = vmul.f32 %v702, %v713
        %v717 = vmul.f32 %v703, %v715
        %v718 = vlaneseq
        %v719 = vshrl.u32 %v718, 7
        %v720 = vsub.s32 0, %v719
        %v721 = vrot.slane %v277, %v720
        %v723 = vsel %vm401, %v716, 0
        %v726 = vsel %vm401, %v717, 0
        %728 = vmatprep.subr.mxu0 0.0
        %729 = vmatpush1.msra.mxu0 %v260
        %730 = vmatprep.subr.mxu0 0.0
        %731 = vmatpush1.msra.mxu0 %v261
        %732 = vmatprep.subr.mxu0 0.0
        %733 = vmatpush1.msra.mxu0 %v262
        %734 = vmatprep.subr.mxu0 0.0
        %735 = vmatpush1.msra.mxu0 %v263
        %736 = vmatprep.subr.mxu0 0.0
        %737 = vmatpush1.msra.mxu0 0.0
        %738 = vmatprep.subr.mxu0 0.0
        %739 = vmatpush1.msra.mxu0 0.0
        %740 = vmatprep.subr.mxu0 0.0
        %741 = vmatpush1.msra.mxu0 0.0
        %742 = vmatprep.subr.mxu0 0.0
        %743 = vmatpush1.msra.mxu0 0.0
        %744 = vmatprep.subr.mxu0 0.0
        %745 = vmatpush1.msra.mxu0 0.0
        %746 = vmatprep.subr.mxu0 0.0
        %747 = vmatpush1.msra.mxu0 0.0
        %748 = vmatprep.subr.mxu0 0.0
        %749 = vmatpush1.msra.mxu0 0.0
        %750 = vmatprep.subr.mxu0 0.0
        %751 = vmatpush1.msra.mxu0 0.0
        %752 = vmatprep.subr.mxu0 0.0
        %753 = vmatpush1.msra.mxu0 0.0
        %754 = vmatprep.subr.mxu0 0.0
        %755 = vmatpush1.msra.mxu0 0.0
        %756 = vmatprep.subr.mxu0 0.0
        %757 = vmatpush1.msra.mxu0 0.0
        %758 = vmatprep.subr.mxu0 0.0
        %759 = vmatpush1.msra.mxu0 0.0
        %760 = vmatprep.subr.mxu0 0.0
        %761 = vmatpush1.msra.mxu0 0.0
        %762 = vmatprep.subr.mxu0 0.0
        %763 = vmatpush1.msra.mxu0 0.0
        %764 = vmatprep.subr.mxu0 0.0
        %765 = vmatpush1.msra.mxu0 0.0
        %766 = vmatprep.subr.mxu0 0.0
        %767 = vmatpush1.msra.mxu0 0.0
        %768 = vmatprep.subr.mxu0 0.0
        %769 = vmatpush1.msra.mxu0 0.0
        %770 = vmatprep.subr.mxu0 0.0
        %771 = vmatpush1.msra.mxu0 0.0
        %772 = vmatprep.subr.mxu0 0.0
        %773 = vmatpush1.msra.mxu0 0.0
        %774 = vmatprep.subr.mxu0 0.0
        %775 = vmatpush1.msra.mxu0 0.0
        %776 = vmatprep.subr.mxu0 0.0
        %777 = vmatpush1.msra.mxu0 0.0
        %778 = vmatprep.subr.mxu0 0.0
        %779 = vmatpush1.msra.mxu0 0.0
        %780 = vmatprep.subr.mxu0 0.0
        %781 = vmatpush1.msra.mxu0 0.0
        %782 = vmatprep.subr.mxu0 0.0
        %783 = vmatpush1.msra.mxu0 0.0
        %784 = vmatprep.subr.mxu0 0.0
        %785 = vmatpush1.msra.mxu0 0.0
        %786 = vmatprep.subr.mxu0 0.0
        %787 = vmatpush1.msra.mxu0 0.0
        %788 = vmatprep.subr.mxu0 0.0
        %789 = vmatpush1.msra.mxu0 0.0
        %790 = vmatprep.subr.mxu0 0.0
        %791 = vmatpush1.msra.mxu0 0.0
        %792 = vmatprep.mubr.f32.mxu0 0.0
        %793 = vmatmul.mubr.f32.gmra.mrb[0].mxu0 %v723
        %v794 = vpop.f32.mrb[0].mxu0
        %v795 = vadd.f32 %v721, %v794
        %v796 = vpop.f32.mrb[0].mxu0
        %797 = vmatprep.mubr.f32.mxu0 0.0
        %798 = vmatmul.mubr.f32.gmra.mrb[0].mxu0 %v726
        %v799 = vpop.f32.mrb[0].mxu0
        %v800 = vadd.f32 %v721, %v799
        %v801 = vpop.f32.mrb[0].mxu0
        %802 = vdwg.mxu0
        %v803 = vxor.u32 %v795, 2147483648
        %v804 = vxor.u32 %v800, 2147483648
        %v805 = vmul.f32 %v803, 1.442695
        %v806 = vpow.pop %v805
        %v807 = vmul.f32 %v804, 1.442695
        %v808 = vpow.pop %v807
        %v809 = vadd.f32 %v806, 1.0
        %v810 = vadd.f32 %v808, 1.0
        %v811 = vrcp.pop %v809
        %v812 = vmul.f32 1.0, %v811
        %v813 = vrcp.pop %v810
        %v814 = vmul.f32 1.0, %v813
        %v815 = vmul.f32 %v795, %v812
        %v816 = vmul.f32 %v800, %v814
        %v817 = vadd.f32 %v534, %v815
        %v818 = vadd.f32 %v535, %v816
        %v819 = vsel %vm401, %v817, 0.0
        %820 = vadd.xlane.f32.xlu0 %v819
        %v821 = vpop.xlane.xlu0 %820
        %v822 = vsel %vm401, %v818, 0.0
        %823 = vadd.xlane.f32.xlu0 %v822
        %v824 = vpop.xlane.xlu0 %823
        %v825 = vmul.f32 %v821, %v503
        %v826 = vmul.f32 %v824, %v503
        %v827 = vsub.f32 %v817, %v825
        %v828 = vsub.f32 %v818, %v826
        %v829 = vmul.f32 %v827, %v827
        %v830 = vmul.f32 %v828, %v828
        %v831 = vsel %vm401, %v829, 0.0
        %832 = vadd.xlane.f32.xlu0 %v831
        %v833 = vpop.xlane.xlu0 %832
        %v834 = vsel %vm401, %v830, 0.0
        %835 = vadd.xlane.f32.xlu0 %v834
        %v836 = vpop.xlane.xlu0 %835
        %v837 = vmul.f32 %v833, %v503
        %v838 = vmul.f32 %v836, %v503
        %v839 = vadd.f32 %v837, 1e-05
        %v840 = vadd.f32 %v838, 1e-05
        %v841 = vrsqrt.pop %v839
        %v842 = vrsqrt.pop %v840
        %v843 = vmul.f32 %v827, %v841
        %v844 = vmul.f32 %v828, %v842
        %v845 = vlaneseq
        %v846 = vshrl.u32 %v845, 7
        %v847 = vsub.s32 0, %v846
        %v848 = vrot.slane %v278, %v847
        %v849 = vmul.f32 %v843, %v848
        %v850 = vmul.f32 %v844, %v848
        %v851 = vlaneseq
        %v852 = vshrl.u32 %v851, 7
        %v853 = vsub.s32 0, %v852
        %v854 = vrot.slane %v279, %v853
        %v855 = vadd.f32 %v849, %v854
        %v856 = vadd.f32 %v850, %v854
        %v858 = vsel %vm401, %v855, 0
        %v861 = vsel %vm401, %v856, 0
        %863 = vmatprep.subr.mxu0 0.0
        %864 = vmatpush1.msra.mxu0 %v256
        %865 = vmatprep.subr.mxu0 0.0
        %866 = vmatpush1.msra.mxu0 %v257
        %867 = vmatprep.subr.mxu0 0.0
        %868 = vmatpush1.msra.mxu0 %v258
        %869 = vmatprep.subr.mxu0 0.0
        %870 = vmatpush1.msra.mxu0 %v259
        %871 = vmatprep.subr.mxu0 0.0
        %872 = vmatpush1.msra.mxu0 0.0
        %873 = vmatprep.subr.mxu0 0.0
        %874 = vmatpush1.msra.mxu0 0.0
        %875 = vmatprep.subr.mxu0 0.0
        %876 = vmatpush1.msra.mxu0 0.0
        %877 = vmatprep.subr.mxu0 0.0
        %878 = vmatpush1.msra.mxu0 0.0
        %879 = vmatprep.subr.mxu0 0.0
        %880 = vmatpush1.msra.mxu0 0.0
        %881 = vmatprep.subr.mxu0 0.0
        %882 = vmatpush1.msra.mxu0 0.0
        %883 = vmatprep.subr.mxu0 0.0
        %884 = vmatpush1.msra.mxu0 0.0
        %885 = vmatprep.subr.mxu0 0.0
        %886 = vmatpush1.msra.mxu0 0.0
        %887 = vmatprep.subr.mxu0 0.0
        %888 = vmatpush1.msra.mxu0 0.0
        %889 = vmatprep.subr.mxu0 0.0
        %890 = vmatpush1.msra.mxu0 0.0
        %891 = vmatprep.subr.mxu0 0.0
        %892 = vmatpush1.msra.mxu0 0.0
        %893 = vmatprep.subr.mxu0 0.0
        %894 = vmatpush1.msra.mxu0 0.0
        %895 = vmatprep.subr.mxu0 0.0
        %896 = vmatpush1.msra.mxu0 0.0
        %897 = vmatprep.subr.mxu0 0.0
        %898 = vmatpush1.msra.mxu0 0.0
        %899 = vmatprep.subr.mxu0 0.0
        %900 = vmatpush1.msra.mxu0 0.0
        %901 = vmatprep.subr.mxu0 0.0
        %902 = vmatpush1.msra.mxu0 0.0
        %903 = vmatprep.subr.mxu0 0.0
        %904 = vmatpush1.msra.mxu0 0.0
        %905 = vmatprep.subr.mxu0 0.0
        %906 = vmatpush1.msra.mxu0 0.0
        %907 = vmatprep.subr.mxu0 0.0
        %908 = vmatpush1.msra.mxu0 0.0
        %909 = vmatprep.subr.mxu0 0.0
        %910 = vmatpush1.msra.mxu0 0.0
        %911 = vmatprep.subr.mxu0 0.0
        %912 = vmatpush1.msra.mxu0 0.0
        %913 = vmatprep.subr.mxu0 0.0
        %914 = vmatpush1.msra.mxu0 0.0
        %915 = vmatprep.subr.mxu0 0.0
        %916 = vmatpush1.msra.mxu0 0.0
        %917 = vmatprep.subr.mxu0 0.0
        %918 = vmatpush1.msra.mxu0 0.0
        %919 = vmatprep.subr.mxu0 0.0
        %920 = vmatpush1.msra.mxu0 0.0
        %921 = vmatprep.subr.mxu0 0.0
        %922 = vmatpush1.msra.mxu0 0.0
        %923 = vmatprep.subr.mxu0 0.0
        %924 = vmatpush1.msra.mxu0 0.0
        %925 = vmatprep.subr.mxu0 0.0
        %926 = vmatpush1.msra.mxu0 0.0
        %927 = vmatprep.mubr.f32.mxu0 0.0
        %928 = vmatmul.mubr.f32.gmra.mrb[0].mxu0 %v858
        %v929 = vpop.f32.mrb[0].mxu0
        %v930 = vadd.f32 0.0, %v929
        %v931 = vpop.f32.mrb[0].mxu0
        %932 = vmatprep.mubr.f32.mxu0 0.0
        %933 = vmatmul.mubr.f32.gmra.mrb[0].mxu0 %v861
        %v934 = vpop.f32.mrb[0].mxu0
        %v935 = vadd.f32 0.0, %v934
        %v936 = vpop.f32.mrb[0].mxu0
        %937 = vdwg.mxu0
        %v938 = vadd.f32 %v619, %v930
        %v939 = vadd.f32 %v620, %v935
        %v940 = vxor.u32 %v938, 2147483648
        %v941 = vxor.u32 %v939, 2147483648
        %v942 = vmul.f32 %v940, 1.442695
        %v943 = vpow.pop %v942
        %v944 = vmul.f32 %v941, 1.442695
        %v945 = vpow.pop %v944
        %v946 = vadd.f32 %v943, 1.0
        %v947 = vadd.f32 %v945, 1.0
        %v948 = vrcp.pop %v946
        %v949 = vmul.f32 1.0, %v948
        %v950 = vrcp.pop %v947
        %v951 = vmul.f32 1.0, %v950
        %v952 = vmul.f32 %v938, %v949
        %v953 = vmul.f32 %v939, %v951
        %v955 = vsel %vm401, %v952, 0
        %v958 = vsel %vm401, %v953, 0
        %960 = vmatprep.subr.mxu0 0.0
        %961 = vmatpush1.msra.mxu0 %v260
        %962 = vmatprep.subr.mxu0 0.0
        %963 = vmatpush1.msra.mxu0 %v261
        %964 = vmatprep.subr.mxu0 0.0
        %965 = vmatpush1.msra.mxu0 %v262
        %966 = vmatprep.subr.mxu0 0.0
        %967 = vmatpush1.msra.mxu0 %v263
        %968 = vmatprep.subr.mxu0 0.0
        %969 = vmatpush1.msra.mxu0 0.0
        %970 = vmatprep.subr.mxu0 0.0
        %971 = vmatpush1.msra.mxu0 0.0
        %972 = vmatprep.subr.mxu0 0.0
        %973 = vmatpush1.msra.mxu0 0.0
        %974 = vmatprep.subr.mxu0 0.0
        %975 = vmatpush1.msra.mxu0 0.0
        %976 = vmatprep.subr.mxu0 0.0
        %977 = vmatpush1.msra.mxu0 0.0
        %978 = vmatprep.subr.mxu0 0.0
        %979 = vmatpush1.msra.mxu0 0.0
        %980 = vmatprep.subr.mxu0 0.0
        %981 = vmatpush1.msra.mxu0 0.0
        %982 = vmatprep.subr.mxu0 0.0
        %983 = vmatpush1.msra.mxu0 0.0
        %984 = vmatprep.subr.mxu0 0.0
        %985 = vmatpush1.msra.mxu0 0.0
        %986 = vmatprep.subr.mxu0 0.0
        %987 = vmatpush1.msra.mxu0 0.0
        %988 = vmatprep.subr.mxu0 0.0
        %989 = vmatpush1.msra.mxu0 0.0
        %990 = vmatprep.subr.mxu0 0.0
        %991 = vmatpush1.msra.mxu0 0.0
        %992 = vmatprep.subr.mxu0 0.0
        %993 = vmatpush1.msra.mxu0 0.0
        %994 = vmatprep.subr.mxu0 0.0
        %995 = vmatpush1.msra.mxu0 0.0
        %996 = vmatprep.subr.mxu0 0.0
        %997 = vmatpush1.msra.mxu0 0.0
        %998 = vmatprep.subr.mxu0 0.0
        %999 = vmatpush1.msra.mxu0 0.0
        %1000 = vmatprep.subr.mxu0 0.0
        %1001 = vmatpush1.msra.mxu0 0.0
        %1002 = vmatprep.subr.mxu0 0.0
        %1003 = vmatpush1.msra.mxu0 0.0
        %1004 = vmatprep.subr.mxu0 0.0
        %1005 = vmatpush1.msra.mxu0 0.0
        %1006 = vmatprep.subr.mxu0 0.0
        %1007 = vmatpush1.msra.mxu0 0.0
        %1008 = vmatprep.subr.mxu0 0.0
        %1009 = vmatpush1.msra.mxu0 0.0
        %1010 = vmatprep.subr.mxu0 0.0
        %1011 = vmatpush1.msra.mxu0 0.0
        %1012 = vmatprep.subr.mxu0 0.0
        %1013 = vmatpush1.msra.mxu0 0.0
        %1014 = vmatprep.subr.mxu0 0.0
        %1015 = vmatpush1.msra.mxu0 0.0
        %1016 = vmatprep.subr.mxu0 0.0
        %1017 = vmatpush1.msra.mxu0 0.0
        %1018 = vmatprep.subr.mxu0 0.0
        %1019 = vmatpush1.msra.mxu0 0.0
        %1020 = vmatprep.subr.mxu0 0.0
        %1021 = vmatpush1.msra.mxu0 0.0
        %1022 = vmatprep.subr.mxu0 0.0
        %1023 = vmatpush1.msra.mxu0 0.0
        %1024 = vmatprep.mubr.f32.mxu0 0.0
        %1025 = vmatmul.mubr.f32.gmra.mrb[0].mxu0 %v955
        %v1026 = vpop.f32.mrb[0].mxu0
        %v1027 = vadd.f32 %v721, %v1026
        %v1028 = vpop.f32.mrb[0].mxu0
        %1029 = vmatprep.mubr.f32.mxu0 0.0
        %1030 = vmatmul.mubr.f32.gmra.mrb[0].mxu0 %v958
        %v1031 = vpop.f32.mrb[0].mxu0
        %v1032 = vadd.f32 %v721, %v1031
        %v1033 = vpop.f32.mrb[0].mxu0
        %1034 = vdwg.mxu0
        %v1035 = vxor.u32 %v1027, 2147483648
        %v1036 = vxor.u32 %v1032, 2147483648
        %v1037 = vmul.f32 %v1035, 1.442695
        %v1038 = vpow.pop %v1037
        %v1039 = vmul.f32 %v1036, 1.442695
        %v1040 = vpow.pop %v1039
        %v1041 = vadd.f32 %v1038, 1.0
        %v1042 = vadd.f32 %v1040, 1.0
        %v1043 = vrcp.pop %v1041
        %v1044 = vmul.f32 1.0, %v1043
        %v1045 = vrcp.pop %v1042
        %v1046 = vmul.f32 1.0, %v1045
        %v1047 = vmul.f32 %v1027, %v1044
        %v1048 = vmul.f32 %v1032, %v1046
        %v1049 = vadd.f32 %v855, %v1047
        %v1050 = vadd.f32 %v856, %v1048
        %v1051 = vsel %vm401, %v1049, 0.0
        %1052 = vadd.xlane.f32.xlu0 %v1051
        %v1053 = vpop.xlane.xlu0 %1052
        %v1054 = vsel %vm401, %v1050, 0.0
        %1055 = vadd.xlane.f32.xlu0 %v1054
        %v1056 = vpop.xlane.xlu0 %1055
        %v1057 = vmul.f32 %v1053, %v503
        %v1058 = vmul.f32 %v1056, %v503
        %v1059 = vsub.f32 %v1049, %v1057
        %v1060 = vsub.f32 %v1050, %v1058
        %v1061 = vmul.f32 %v1059, %v1059
        %v1062 = vmul.f32 %v1060, %v1060
        %v1063 = vsel %vm401, %v1061, 0.0
        %1064 = vadd.xlane.f32.xlu0 %v1063
        %v1065 = vpop.xlane.xlu0 %1064
        %v1066 = vsel %vm401, %v1062, 0.0
        %1067 = vadd.xlane.f32.xlu0 %v1066
        %v1068 = vpop.xlane.xlu0 %1067
        %v1069 = vmul.f32 %v1065, %v503
        %v1070 = vmul.f32 %v1068, %v503
        %v1071 = vadd.f32 %v1069, 1e-05
        %v1072 = vadd.f32 %v1070, 1e-05
        %v1073 = vrsqrt.pop %v1071
        %v1074 = vrsqrt.pop %v1072
        %v1075 = vmul.f32 %v1059, %v1073
        %v1076 = vmul.f32 %v1060, %v1074
        %v1077 = vmul.f32 %v1075, %v848
        %v1078 = vmul.f32 %v1076, %v848
        %v1079 = vadd.f32 %v1077, %v854
        %v1080 = vadd.f32 %v1078, %v854
        %v1081 = vadd.f32 %v1079, %v1080
        %v1082 = vlaneseq
        %v1083 = vshrl.u32 %v1082, 7
        %v1084 = vsub.s32 0, %v1083
        %v1085 = vrot.slane %v280, %v1084
        %v1087 = vsel %vm401, %v1081, 0
        %1089 = vmatprep.subr.mxu0 0.0
        %1090 = vmatpush1.msra.mxu0 %v264
        %1091 = vmatprep.subr.mxu0 0.0
        %1092 = vmatpush1.msra.mxu0 %v265
        %1093 = vmatprep.subr.mxu0 0.0
        %1094 = vmatpush1.msra.mxu0 %v266
        %1095 = vmatprep.subr.mxu0 0.0
        %1096 = vmatpush1.msra.mxu0 %v267
        %1097 = vmatprep.subr.mxu0 0.0
        %1098 = vmatpush1.msra.mxu0 0.0
        %1099 = vmatprep.subr.mxu0 0.0
        %1100 = vmatpush1.msra.mxu0 0.0
        %1101 = vmatprep.subr.mxu0 0.0
        %1102 = vmatpush1.msra.mxu0 0.0
        %1103 = vmatprep.subr.mxu0 0.0
        %1104 = vmatpush1.msra.mxu0 0.0
        %1105 = vmatprep.subr.mxu0 0.0
        %1106 = vmatpush1.msra.mxu0 0.0
        %1107 = vmatprep.subr.mxu0 0.0
        %1108 = vmatpush1.msra.mxu0 0.0
        %1109 = vmatprep.subr.mxu0 0.0
        %1110 = vmatpush1.msra.mxu0 0.0
        %1111 = vmatprep.subr.mxu0 0.0
        %1112 = vmatpush1.msra.mxu0 0.0
        %1113 = vmatprep.subr.mxu0 0.0
        %1114 = vmatpush1.msra.mxu0 0.0
        %1115 = vmatprep.subr.mxu0 0.0
        %1116 = vmatpush1.msra.mxu0 0.0
        %1117 = vmatprep.subr.mxu0 0.0
        %1118 = vmatpush1.msra.mxu0 0.0
        %1119 = vmatprep.subr.mxu0 0.0
        %1120 = vmatpush1.msra.mxu0 0.0
        %1121 = vmatprep.subr.mxu0 0.0
        %1122 = vmatpush1.msra.mxu0 0.0
        %1123 = vmatprep.subr.mxu0 0.0
        %1124 = vmatpush1.msra.mxu0 0.0
        %1125 = vmatprep.subr.mxu0 0.0
        %1126 = vmatpush1.msra.mxu0 0.0
        %1127 = vmatprep.subr.mxu0 0.0
        %1128 = vmatpush1.msra.mxu0 0.0
        %1129 = vmatprep.subr.mxu0 0.0
        %1130 = vmatpush1.msra.mxu0 0.0
        %1131 = vmatprep.subr.mxu0 0.0
        %1132 = vmatpush1.msra.mxu0 0.0
        %1133 = vmatprep.subr.mxu0 0.0
        %1134 = vmatpush1.msra.mxu0 0.0
        %1135 = vmatprep.subr.mxu0 0.0
        %1136 = vmatpush1.msra.mxu0 0.0
        %1137 = vmatprep.subr.mxu0 0.0
        %1138 = vmatpush1.msra.mxu0 0.0
        %1139 = vmatprep.subr.mxu0 0.0
        %1140 = vmatpush1.msra.mxu0 0.0
        %1141 = vmatprep.subr.mxu0 0.0
        %1142 = vmatpush1.msra.mxu0 0.0
        %1143 = vmatprep.subr.mxu0 0.0
        %1144 = vmatpush1.msra.mxu0 0.0
        %1145 = vmatprep.subr.mxu0 0.0
        %1146 = vmatpush1.msra.mxu0 0.0
        %1147 = vmatprep.subr.mxu0 0.0
        %1148 = vmatpush1.msra.mxu0 0.0
        %1149 = vmatprep.subr.mxu0 0.0
        %1150 = vmatpush1.msra.mxu0 0.0
        %1151 = vmatprep.subr.mxu0 0.0
        %1152 = vmatpush1.msra.mxu0 0.0
        %1153 = vmatprep.mubr.f32.mxu0 0.0
        %1154 = vmatmul.mubr.f32.gmra.mrb[0].mxu0 %v1087
        %v1155 = vpop.f32.mrb[0].mxu0
        %v1156 = vadd.f32 %v1085, %v1155
        %v1157 = vpop.f32.mrb[0].mxu0
        %1158 = vdwg.mxu0
        %v1159 = vxor.u32 %v1156, 2147483648
        %v1160 = vmul.f32 %v1159, 1.442695
        %v1161 = vpow.pop %v1160
        %v1162 = vadd.f32 %v1161, 1.0
        %v1163 = vrcp.pop %v1162
        %v1164 = vmul.f32 1.0, %v1163
        %v1165 = vmul.f32 %v1156, %v1164
        %v1166 = vlaneseq
        %v1167 = vshrl.u32 %v1166, 7
        %v1168 = vsub.s32 0, %v1167
        %v1169 = vrot.slane %v281, %v1168
        %v1171 = vsel %vm401, %v1165, 0
        %1173 = vmatprep.subr.mxu0 0.0
        %1174 = vmatpush1.msra.mxu0 %v268
        %1175 = vmatprep.subr.mxu0 0.0
        %1176 = vmatpush1.msra.mxu0 %v269
        %1177 = vmatprep.subr.mxu0 0.0
        %1178 = vmatpush1.msra.mxu0 %v270
        %1179 = vmatprep.subr.mxu0 0.0
        %1180 = vmatpush1.msra.mxu0 %v271
        %1181 = vmatprep.subr.mxu0 0.0
        %1182 = vmatpush1.msra.mxu0 0.0
        %1183 = vmatprep.subr.mxu0 0.0
        %1184 = vmatpush1.msra.mxu0 0.0
        %1185 = vmatprep.subr.mxu0 0.0
        %1186 = vmatpush1.msra.mxu0 0.0
        %1187 = vmatprep.subr.mxu0 0.0
        %1188 = vmatpush1.msra.mxu0 0.0
        %1189 = vmatprep.subr.mxu0 0.0
        %1190 = vmatpush1.msra.mxu0 0.0
        %1191 = vmatprep.subr.mxu0 0.0
        %1192 = vmatpush1.msra.mxu0 0.0
        %1193 = vmatprep.subr.mxu0 0.0
        %1194 = vmatpush1.msra.mxu0 0.0
        %1195 = vmatprep.subr.mxu0 0.0
        %1196 = vmatpush1.msra.mxu0 0.0
        %1197 = vmatprep.subr.mxu0 0.0
        %1198 = vmatpush1.msra.mxu0 0.0
        %1199 = vmatprep.subr.mxu0 0.0
        %1200 = vmatpush1.msra.mxu0 0.0
        %1201 = vmatprep.subr.mxu0 0.0
        %1202 = vmatpush1.msra.mxu0 0.0
        %1203 = vmatprep.subr.mxu0 0.0
        %1204 = vmatpush1.msra.mxu0 0.0
        %1205 = vmatprep.subr.mxu0 0.0
        %1206 = vmatpush1.msra.mxu0 0.0
        %1207 = vmatprep.subr.mxu0 0.0
        %1208 = vmatpush1.msra.mxu0 0.0
        %1209 = vmatprep.subr.mxu0 0.0
        %1210 = vmatpush1.msra.mxu0 0.0
        %1211 = vmatprep.subr.mxu0 0.0
        %1212 = vmatpush1.msra.mxu0 0.0
        %1213 = vmatprep.subr.mxu0 0.0
        %1214 = vmatpush1.msra.mxu0 0.0
        %1215 = vmatprep.subr.mxu0 0.0
        %1216 = vmatpush1.msra.mxu0 0.0
        %1217 = vmatprep.subr.mxu0 0.0
        %1218 = vmatpush1.msra.mxu0 0.0
        %1219 = vmatprep.subr.mxu0 0.0
        %1220 = vmatpush1.msra.mxu0 0.0
        %1221 = vmatprep.subr.mxu0 0.0
        %1222 = vmatpush1.msra.mxu0 0.0
        %1223 = vmatprep.subr.mxu0 0.0
        %1224 = vmatpush1.msra.mxu0 0.0
        %1225 = vmatprep.subr.mxu0 0.0
        %1226 = vmatpush1.msra.mxu0 0.0
        %1227 = vmatprep.subr.mxu0 0.0
        %1228 = vmatpush1.msra.mxu0 0.0
        %1229 = vmatprep.subr.mxu0 0.0
        %1230 = vmatpush1.msra.mxu0 0.0
        %1231 = vmatprep.subr.mxu0 0.0
        %1232 = vmatpush1.msra.mxu0 0.0
        %1233 = vmatprep.subr.mxu0 0.0
        %1234 = vmatpush1.msra.mxu0 0.0
        %1235 = vmatprep.subr.mxu0 0.0
        %1236 = vmatpush1.msra.mxu0 0.0
        %1237 = vmatprep.mubr.f32.mxu0 0.0
        %1238 = vmatmul.mubr.f32.gmra.mrb[0].mxu0 %v1171
        %v1239 = vpop.f32.mrb[0].mxu0
        %v1240 = vadd.f32 %v1169, %v1239
        %v1241 = vpop.f32.mrb[0].mxu0
        %1242 = vdwg.mxu0
        %1243 = vst.msk [vmem:[%s250] sm:$0xff] %vm297, %v1240
        %p1244 = scmp.lt.s32.totalorder %s15, 1
        %s1245 = scalar_select %p1244, %s15, 1
        %s1246 = smul.addr %s1245, 8
        %s1247 = scalar_lea.vmem %s4, %s1246
        // Predicated region
        $region75: #{endpoint_vector_field_forward.3} parent=69 // pred_check
          %p1248 = pneg %p127
        $region76: #{endpoint_vector_field_forward.3} parent=69 // pred_check_branch
          %1250 = sbr.rel (%p1248) target = $region78
        $region77: #{endpoint_vector_field_forward.3} parent=69 // pred_region
          _
        $region78: #{endpoint_vector_field_forward.3} parent=69 // pred_fallthru
          _
      $region70: #{endpoint_vector_field_forward.3} parent=5 // pred_fallthru
        _
      %p1251 = scmp.le.s32.totalorder 2, %s10
      // Predicated region
      $region79: #{endpoint_vector_field_forward.3} parent=5 // pred_check
        %p1252 = pneg %p1251
      $region80: #{endpoint_vector_field_forward.3} parent=5 // pred_check_branch
        %1254 = sbr.rel (%p1252) target = $region82
      $region81: #{endpoint_vector_field_forward.3} parent=5 // pred_region
        %s1255 = ssub.s32 %s10, 2
        // Predicated region
        $region83: #{endpoint_vector_field_forward.3} parent=81 // pred_check
          %p1256 = pneg %p133
        $region84: #{endpoint_vector_field_forward.3} parent=81 // pred_check_branch
          %1258 = sbr.rel (%p1256) target = $region86
        $region85: #{endpoint_vector_field_forward.3} parent=81 // pred_region
          %p1259 = scmp.lt.s32.totalorder %s16, 1
          %s1260 = scalar_select %p1259, %s16, 1
          %s1261 = smul.addr %s1260, 8
          %s1262 = scalar_lea.vmem %s4, %s1261
        $region86: #{endpoint_vector_field_forward.3} parent=81 // pred_fallthru
          _
      $region82: #{endpoint_vector_field_forward.3} parent=5 // pred_fallthru
        _
    $region6: #{endpoint_vector_field_forward.3} parent=1 // loop_footer
      %s14 = sadd.s32 1, %s10
    $region7: #{endpoint_vector_field_forward.3} parent=1 // loop_footer_branch
      %9 = sbr.rel target = $region3
    $region8: #{endpoint_vector_field_forward.3} parent=1 // loop_exit
      _

</llo_original>
